<compile_context>
chip_gen: v7x
topology: tpu7x:2x2x1
jax: 0.10.0
libtpu: 0.0.40
codegen_flags: <defaults>
</compile_context>

<pallas_src>
import functools

import jax
import jax.numpy as jnp
from jax.experimental import pallas as pl
from jax.experimental.pallas import tpu as pltpu


# ----------------------------------------------------------------------------
# Pallas kernel: whole BasicBlock forward for one image per grid step.
#   conv1(3x3, pad1) -> bn1 -> relu -> conv2(3x3, pad1) -> bn2
#   + shortcut( conv(1x1) -> bn )  -> relu
# Every conv is a single MXU matmul against a pre-built block-Toeplitz weight.
# ----------------------------------------------------------------------------
def _basic_block_kernel(xp_ref, w1_ref, b1_ref, w2_ref, ws_ref, bss_ref, o_ref,
                        *, H, W, Cin, Cmid):
    xp = xp_ref[0]                                    # (H+2, (W+2)*Cin), zero-padded

    # ---- conv1 + bn1(scale folded) + relu : one matmul -----------------------
    x1 = jnp.concatenate([xp[0:H, :], xp[1:H + 1, :], xp[2:H + 2, :]], axis=1)
    h1 = jnp.dot(x1, w1_ref[...], preferred_element_type=jnp.float32)    # (H, W*Cmid)
    h1 = jnp.maximum(h1 + b1_ref[...], 0.0)

    # ---- zero halo for conv2 (no scratch / no full zero-fill) ----------------
    zc = jnp.zeros((H, Cmid), jnp.float32)
    zr = jnp.zeros((1, (W + 2) * Cmid), jnp.float32)
    h1p = jnp.concatenate([zc, h1, zc], axis=1)       # (H,   (W+2)*Cmid)
    h1p = jnp.concatenate([zr, h1p, zr], axis=0)      # (H+2, (W+2)*Cmid)

    # ---- conv2 + bn2(scale folded) : one matmul ------------------------------
    x2 = jnp.concatenate([h1p[0:H, :], h1p[1:H + 1, :], h1p[2:H + 2, :]], axis=1)
    h2 = jnp.dot(x2, w2_ref[...], preferred_element_type=jnp.float32)    # (H, W*Cmid)

    # ---- shortcut: 1x1 conv (block-diagonal weight, bn scale folded) ---------
    xc = xp[1:H + 1, Cin:(W + 1) * Cin]               # (H, W*Cin), un-padded center
    sc = jnp.dot(xc, ws_ref[...], preferred_element_type=jnp.float32)    # (H, W*Cmid)

    # bn2 bias and shortcut-bn bias are pre-summed into bss_ref.
    o_ref[0] = jnp.maximum(h2 + sc + bss_ref[...], 0.0).astype(o_ref.dtype)


# ----------------------------------------------------------------------------
# Weight preparation (one-time, plain JAX): conv -> matmul form, BN folding.
# ----------------------------------------------------------------------------
def _toeplitz_weight_3x3(w_hwio, W):
    """(3,3,Cin,Cout) HWIO conv weight -> (3*(W+2)*Cin, W*Cout) so that
    rowstack(padded_rows) @ result == conv(x, w, stride=1, pad=1) per image row."""
    KH, KW, Cin, Cout = w_hwio.shape
    eye = jnp.eye(W, dtype=w_hwio.dtype)
    blocks = []
    for kh in range(KH):
        acc = jnp.zeros(((W + 2) * Cin, W * Cout), w_hwio.dtype)
        for kw in range(KW):
            bd = jnp.einsum("wv,ic->wivc", eye,
                            w_hwio[kh, kw]).reshape(W * Cin, W * Cout)
            acc = acc + jnp.pad(bd, ((kw * Cin, (KW - 1 - kw) * Cin), (0, 0)))
        blocks.append(acc)
    return jnp.concatenate(blocks, axis=0)


def _block_diag_1x1(w_io, W):
    """(Cin,Cout) 1x1 conv weight -> block-diagonal (W*Cin, W*Cout) matmul weight."""
    Cin, Cout = w_io.shape
    eye = jnp.eye(W, dtype=w_io.dtype)
    return jnp.einsum("wv,ic->wivc", eye, w_io).reshape(W * Cin, W * Cout)


def prepare_params(w1, s1, b1, w2, s2, b2, ws, ss, bs, W):
    """Fold BN scales into conv weights and build matmul-form weights / bias rows."""
    Cmid = w1.shape[-1]
    w1f = w1 * s1.reshape(1, 1, 1, Cmid)
    w2f = w2 * s2.reshape(1, 1, 1, Cmid)
    wsf = ws * ss.reshape(1, Cmid)
    return dict(
        w1big=_toeplitz_weight_3x3(w1f, W),                       # (3*(W+2)*Cin, W*Cmid)
        w2big=_toeplitz_weight_3x3(w2f, W),                       # (3*(W+2)*Cmid, W*Cmid)
        wsbig=_block_diag_1x1(wsf, W),                            # (W*Cin, W*Cmid)
        b1row=jnp.tile(b1.reshape(-1), W).reshape(1, W * Cmid),
        bssrow=jnp.tile(b2.reshape(-1) + bs.reshape(-1), W).reshape(1, W * Cmid),
    )


# ----------------------------------------------------------------------------
# Wrapper: NCHW <-> lane-dense slabs, pallas_call setup.
# ----------------------------------------------------------------------------
def basic_block_forward(x_nchw, p):
    N, Cin, H, W = x_nchw.shape
    Cmid = p["w1big"].shape[1] // W

    x = jnp.transpose(x_nchw, (0, 2, 3, 1))                       # NCHW -> NHWC
    xp = jnp.pad(x, ((0, 0), (1, 1), (1, 1), (0, 0)))
    xp2 = xp.reshape(N, H + 2, (W + 2) * Cin)                     # lane-dense slab

    kernel = functools.partial(_basic_block_kernel, H=H, W=W, Cin=Cin, Cmid=Cmid)

    out2d = pl.pallas_call(
        kernel,
        out_shape=jax.ShapeDtypeStruct((N, H, W * Cmid), jnp.float32),
        grid_spec=pltpu.PrefetchScalarGridSpec(
            num_scalar_prefetch=0,
            grid=(N,),
            in_specs=[
                pl.BlockSpec((1, H + 2, (W + 2) * Cin), lambda n: (n, 0, 0)),
                pl.BlockSpec(p["w1big"].shape, lambda n: (0, 0)),
                pl.BlockSpec(p["b1row"].shape, lambda n: (0, 0)),
                pl.BlockSpec(p["w2big"].shape, lambda n: (0, 0)),
                pl.BlockSpec(p["wsbig"].shape, lambda n: (0, 0)),
                pl.BlockSpec(p["bssrow"].shape, lambda n: (0, 0)),
            ],
            out_specs=pl.BlockSpec((1, H, W * Cmid), lambda n: (n, 0, 0)),
        ),
        compiler_params=pltpu.CompilerParams(
            dimension_semantics=("parallel",)),
    )(xp2, p["w1big"], p["b1row"], p["w2big"], p["wsbig"], p["bssrow"])

    out = out2d.reshape(N, H, W, Cmid)
    return jnp.transpose(out, (0, 3, 1, 2))                       # NHWC -> NCHW


# ----------------------------------------------------------------------------
# Deterministic parameter construction (packed grouped conv -> dense HWIO).
# ----------------------------------------------------------------------------
def _packed_dense_weight(key, in_ch, out_ch, groups, k):
    """PyTorch grouped conv weight (out,in//g,k,k) -> dense block-diagonal HWIO."""
    in_pg, out_pg = in_ch // groups, out_ch // groups
    w = 0.1 * jax.random.normal(key, (out_ch, in_pg, k, k), jnp.float32)
    dense = jnp.zeros((k, k, in_ch, out_ch), jnp.float32)
    for g in range(groups):
        wg = w[g * out_pg:(g + 1) * out_pg]          # (out_pg, in_pg, k, k)
        dense = dense.at[:, :, g * in_pg:(g + 1) * in_pg,
                         g * out_pg:(g + 1) * out_pg].set(
            jnp.transpose(wg, (2, 3, 1, 0)))
    return dense


def _bn_fold(key, C, eps=1e-5):
    kg, kb, km, kv = jax.random.split(key, 4)
    gamma = 1.0 + 0.1 * jax.random.normal(kg, (C,), jnp.float32)
    beta = 0.1 * jax.random.normal(kb, (C,), jnp.float32)
    mean = 0.1 * jax.random.normal(km, (C,), jnp.float32)
    var = jnp.abs(jax.random.normal(kv, (C,), jnp.float32)) + 0.5
    scale = gamma / jnp.sqrt(var + eps)
    bias = beta - mean * scale
    return scale.reshape(1, C), bias.reshape(1, C)


if __name__ == "__main__":
    # BasicBlock(in_planes=4, planes=8, stride=1, alpha=2, num_estimators=4,
    #            gamma=1, groups=1)  ->  shortcut conv path is exercised.
    in_planes, planes = 4, 8
    alpha, num_estimators, gamma_p, groups = 2, 4, 1, 1
    Cin = in_planes * alpha                       # 8  (packed/extended channels)
    Cmid = planes * alpha                         # 16
    g1 = num_estimators * groups                  # conv1 groups
    g2 = num_estimators * gamma_p * groups        # conv2 / shortcut groups
    N, H, W = 2, 16, 16

    key = jax.random.PRNGKey(0)
    keys = jax.random.split(key, 7)
    w1 = _packed_dense_weight(keys[0], Cin, Cmid, g1, 3)        # (3,3,Cin,Cmid)
    w2 = _packed_dense_weight(keys[1], Cmid, Cmid, g2, 3)       # (3,3,Cmid,Cmid)
    ws4 = _packed_dense_weight(keys[2], Cin, Cmid, g2, 1)       # (1,1,Cin,Cmid)
    s1, b1 = _bn_fold(keys[3], Cmid)
    s2, b2 = _bn_fold(keys[4], Cmid)
    ss, bs = _bn_fold(keys[5], Cmid)
    x = jax.random.normal(keys[6], (N, Cin, H, W), jnp.float32)

    params = prepare_params(w1, s1, b1, w2, s2, b2,
                            ws4.reshape(Cin, Cmid), ss, bs, W)

    out = basic_block_forward(x, params)
    out = jax.block_until_ready(out)

    # Pure-JAX reference (same folded-BN eval semantics).
    x_nhwc = jnp.transpose(x, (0, 2, 3, 1))

    def conv(xh, w, pad):
        return jax.lax.conv_general_dilated(
            xh, w, (1, 1), [(pad, pad), (pad, pad)],
            dimension_numbers=("NHWC", "HWIO", "NHWC"))

    r1 = jnp.maximum(conv(x_nhwc, w1, 1) * s1.reshape(1, 1, 1, -1)
                     + b1.reshape(1, 1, 1, -1), 0.0)
    r2 = conv(r1, w2, 1) * s2.reshape(1, 1, 1, -1) + b2.reshape(1, 1, 1, -1)
    rs = conv(x_nhwc, ws4, 0) * ss.reshape(1, 1, 1, -1) + bs.reshape(1, 1, 1, -1)
    ref = jnp.transpose(jnp.maximum(r2 + rs, 0.0), (0, 3, 1, 2))

    err = float(jnp.max(jnp.abs(out - ref)))
    assert jnp.allclose(out, ref, rtol=1e-3, atol=1e-3), err
    print("KERNEL_OK")
</pallas_src>

<mosaic_0001>
module attributes {stable_mosaic.version = 11 : i64} {
  func.func @_basic_block_kernel(%arg0: i32, %arg1: memref<1x18x144xf32, #tpu.memory_space<vmem>>, %arg2: memref<432x256xf32, #tpu.memory_space<vmem>>, %arg3: memref<1x256xf32, #tpu.memory_space<vmem>>, %arg4: memref<864x256xf32, #tpu.memory_space<vmem>>, %arg5: memref<128x256xf32, #tpu.memory_space<vmem>>, %arg6: memref<1x256xf32, #tpu.memory_space<vmem>>, %arg7: memref<1x16x256xf32, #tpu.memory_space<vmem>>) attributes {dimension_semantics = [#tpu.dimension_semantics<parallel>], iteration_bounds = array<i64: 2>, scalar_prefetch = 0 : i64, scratch_operands = 0 : i64, tpu.core_type = #tpu.core_type<tc>, window_params = [{transform_indices = @transform_0, window_bounds = array<i64: 1, 18, 144>}, {pipeline_mode = #tpu.pipeline_mode<synchronous>, transform_indices = @transform_1, window_bounds = array<i64: 432, 256>}, {pipeline_mode = #tpu.pipeline_mode<synchronous>, transform_indices = @transform_2, window_bounds = array<i64: 1, 256>}, {pipeline_mode = #tpu.pipeline_mode<synchronous>, transform_indices = @transform_3, window_bounds = array<i64: 864, 256>}, {pipeline_mode = #tpu.pipeline_mode<synchronous>, transform_indices = @transform_4, window_bounds = array<i64: 128, 256>}, {pipeline_mode = #tpu.pipeline_mode<synchronous>, transform_indices = @transform_5, window_bounds = array<i64: 1, 256>}, {transform_indices = @transform_6, window_bounds = array<i64: 1, 16, 256>}]} {
    %c0 = arith.constant 0 : index
    %c0_0 = arith.constant 0 : index
    %c0_1 = arith.constant 0 : index
    %0 = vector.load %arg1[%c0, %c0_0, %c0_1] : memref<1x18x144xf32, #tpu.memory_space<vmem>>, vector<1x18x144xf32>
    %1 = vector.shape_cast %0 : vector<1x18x144xf32> to vector<18x144xf32>
    %2 = vector.extract_strided_slice %1 {offsets = [0, 0], sizes = [16, 144], strides = [1, 1]} : vector<18x144xf32> to vector<16x144xf32>
    %3 = vector.extract_strided_slice %1 {offsets = [1, 0], sizes = [16, 144], strides = [1, 1]} : vector<18x144xf32> to vector<16x144xf32>
    %4 = vector.extract_strided_slice %1 {offsets = [2, 0], sizes = [16, 144], strides = [1, 1]} : vector<18x144xf32> to vector<16x144xf32>
    %5 = tpu.concatenate %2, %3, %4 in 1 : vector<16x144xf32>, vector<16x144xf32>, vector<16x144xf32> -> vector<16x432xf32>
    %c0_2 = arith.constant 0 : index
    %c0_3 = arith.constant 0 : index
    %6 = vector.load %arg2[%c0_2, %c0_3] : memref<432x256xf32, #tpu.memory_space<vmem>>, vector<432x256xf32>
    %cst = arith.constant dense<0.000000e+00> : vector<16x256xf32>
    %7 = tpu.matmul %5, %6, %cst {dimension_numbers = #tpu.dot_dimension_numbers<[1], [0], [0], [1], [0, 0, 1, 1], [], []>} : vector<16x432xf32>, vector<432x256xf32>, vector<16x256xf32> -> vector<16x256xf32>
    %c0_4 = arith.constant 0 : index
    %c0_5 = arith.constant 0 : index
    %8 = vector.load %arg3[%c0_4, %c0_5] : memref<1x256xf32, #tpu.memory_space<vmem>>, vector<1x256xf32>
    %9 = vector.broadcast %8 : vector<1x256xf32> to vector<16x256xf32>
    %10 = arith.addf %7, %9 : vector<16x256xf32>
    %cst_6 = arith.constant 0.000000e+00 : f32
    %11 = vector.broadcast %cst_6 : f32 to vector<16x256xf32>
    %12 = arith.maximumf %10, %11 : vector<16x256xf32>
    %cst_7 = arith.constant 0.000000e+00 : f32
    %13 = vector.broadcast %cst_7 : f32 to vector<16x16xf32>
    %cst_8 = arith.constant 0.000000e+00 : f32
    %14 = vector.broadcast %cst_8 : f32 to vector<1x288xf32>
    %15 = tpu.concatenate %13, %12, %13 in 1 : vector<16x16xf32>, vector<16x256xf32>, vector<16x16xf32> -> vector<16x288xf32>
    %16 = tpu.concatenate %14, %15, %14 in 0 : vector<1x288xf32>, vector<16x288xf32>, vector<1x288xf32> -> vector<18x288xf32>
    %17 = vector.extract_strided_slice %16 {offsets = [0, 0], sizes = [16, 288], strides = [1, 1]} : vector<18x288xf32> to vector<16x288xf32>
    %18 = vector.extract_strided_slice %16 {offsets = [1, 0], sizes = [16, 288], strides = [1, 1]} : vector<18x288xf32> to vector<16x288xf32>
    %19 = vector.extract_strided_slice %16 {offsets = [2, 0], sizes = [16, 288], strides = [1, 1]} : vector<18x288xf32> to vector<16x288xf32>
    %20 = tpu.concatenate %17, %18, %19 in 1 : vector<16x288xf32>, vector<16x288xf32>, vector<16x288xf32> -> vector<16x864xf32>
    %c0_9 = arith.constant 0 : index
    %c0_10 = arith.constant 0 : index
    %21 = vector.load %arg4[%c0_9, %c0_10] : memref<864x256xf32, #tpu.memory_space<vmem>>, vector<864x256xf32>
    %cst_11 = arith.constant dense<0.000000e+00> : vector<16x256xf32>
    %22 = tpu.matmul %20, %21, %cst_11 {dimension_numbers = #tpu.dot_dimension_numbers<[1], [0], [0], [1], [0, 0, 1, 1], [], []>} : vector<16x864xf32>, vector<864x256xf32>, vector<16x256xf32> -> vector<16x256xf32>
    %23 = vector.extract_strided_slice %1 {offsets = [1, 8], sizes = [16, 128], strides = [1, 1]} : vector<18x144xf32> to vector<16x128xf32>
    %c0_12 = arith.constant 0 : index
    %c0_13 = arith.constant 0 : index
    %24 = vector.load %arg5[%c0_12, %c0_13] : memref<128x256xf32, #tpu.memory_space<vmem>>, vector<128x256xf32>
    %cst_14 = arith.constant dense<0.000000e+00> : vector<16x256xf32>
    %25 = tpu.matmul %23, %24, %cst_14 {dimension_numbers = #tpu.dot_dimension_numbers<[1], [0], [0], [1], [0, 0, 1, 1], [], []>} : vector<16x128xf32>, vector<128x256xf32>, vector<16x256xf32> -> vector<16x256xf32>
    %26 = arith.addf %22, %25 : vector<16x256xf32>
    %c0_15 = arith.constant 0 : index
    %c0_16 = arith.constant 0 : index
    %27 = vector.load %arg6[%c0_15, %c0_16] : memref<1x256xf32, #tpu.memory_space<vmem>>, vector<1x256xf32>
    %28 = vector.broadcast %27 : vector<1x256xf32> to vector<16x256xf32>
    %29 = arith.addf %26, %28 : vector<16x256xf32>
    %cst_17 = arith.constant 0.000000e+00 : f32
    %30 = vector.broadcast %cst_17 : f32 to vector<16x256xf32>
    %31 = arith.maximumf %29, %30 : vector<16x256xf32>
    %c0_18 = arith.constant 0 : index
    %c0_19 = arith.constant 0 : index
    %c0_20 = arith.constant 0 : index
    %32 = vector.load %arg7[%c0_18, %c0_19, %c0_20] : memref<1x16x256xf32, #tpu.memory_space<vmem>>, vector<1x16x256xf32>
    %33 = vector.shape_cast %32 : vector<1x16x256xf32> to vector<16x256xf32>
    %34 = vector.shape_cast %31 : vector<16x256xf32> to vector<1x16x256xf32>
    tpu.vector_store %arg7[%c0_18, %c0_19, %c0_20], %34 {strides = array<i32>} : memref<1x16x256xf32, #tpu.memory_space<vmem>>, vector<1x16x256xf32>,
    return
  }
  func.func @transform_0(%arg0: i32) -> (i32, i32, i32) {
    %c0_i32 = arith.constant 0 : i32
    %c0_i32_0 = arith.constant 0 : i32
    %c0_i32_1 = arith.constant 0 : i32
    return %arg0, %c0_i32, %c0_i32_0 : i32, i32, i32
  }
  func.func @transform_1(%arg0: i32) -> (i32, i32) {
    %c0_i32 = arith.constant 0 : i32
    %c0_i32_0 = arith.constant 0 : i32
    %c0_i32_1 = arith.constant 0 : i32
    return %c0_i32, %c0_i32_0 : i32, i32
  }
  func.func @transform_2(%arg0: i32) -> (i32, i32) {
    %c0_i32 = arith.constant 0 : i32
    %c0_i32_0 = arith.constant 0 : i32
    %c0_i32_1 = arith.constant 0 : i32
    return %c0_i32, %c0_i32_0 : i32, i32
  }
  func.func @transform_3(%arg0: i32) -> (i32, i32) {
    %c0_i32 = arith.constant 0 : i32
    %c0_i32_0 = arith.constant 0 : i32
    %c0_i32_1 = arith.constant 0 : i32
    return %c0_i32, %c0_i32_0 : i32, i32
  }
  func.func @transform_4(%arg0: i32) -> (i32, i32) {
    %c0_i32 = arith.constant 0 : i32
    %c0_i32_0 = arith.constant 0 : i32
    %c0_i32_1 = arith.constant 0 : i32
    return %c0_i32, %c0_i32_0 : i32, i32
  }
  func.func @transform_5(%arg0: i32) -> (i32, i32) {
    %c0_i32 = arith.constant 0 : i32
    %c0_i32_0 = arith.constant 0 : i32
    %c0_i32_1 = arith.constant 0 : i32
    return %c0_i32, %c0_i32_0 : i32, i32
  }
  func.func @transform_6(%arg0: i32) -> (i32, i32, i32) {
    %c0_i32 = arith.constant 0 : i32
    %c0_i32_0 = arith.constant 0 : i32
    %c0_i32_1 = arith.constant 0 : i32
    return %arg0, %c0_i32, %c0_i32_0 : i32, i32, i32
  }
}

</mosaic_0001>

<llo_original>
// kernel: tpu_custom_call.1
$region0: #{tpu_custom_call.1}
  #allocation0 [shape = 'u32[]', space=smem, size = 0x4, offset = 0x4, fixed_abs, tag = 'smem constant byte address 0x4 - core index']
  #allocation1 [shape = 'u32[144,128]{1,0:T(1,128)}', space=vmem, size = 0x12000, scoped, tag = 'internal scratch']
  %s0 = inlined_call_operand.vmem [shape: f32[2,18,144], index: 0, kind: input, shape index: {}]
  %s1 = inlined_call_operand.hbm [shape: f32[432,256], index: 1, kind: input, shape index: {}]
  %s2 = inlined_call_operand.vmem [shape: f32[1,256], index: 2, kind: input, shape index: {}]
  %s3 = inlined_call_operand.hbm [shape: f32[864,256], index: 3, kind: input, shape index: {}]
  %s4 = inlined_call_operand.hbm [shape: f32[128,256], index: 4, kind: input, shape index: {}]
  %s5 = inlined_call_operand.vmem [shape: f32[1,256], index: 5, kind: input, shape index: {}]
  %s6 = inlined_call_operand.hbm [shape: f32[2,16,256], index: 6, kind: output, shape index: {}]
  %s7 = sld [smem:[#allocation0]]
  $region69: #{tpu_custom_call.1} parent=0
    _
  %s9 = ssub.s32 1, %s7
  %s10 = scalar_select 0, %s9, %s7
  $region1: #{tpu_custom_call.1} parent=0
    #allocation2 [shape = 'u8[442368]{0}', space=vmem, size = 0x6c000, scoped, tag = 'input window, operand 1, single buffered']
    #allocation3 [shape = 's32[2]{0}', space=sflag, size = 0x8, scoped, tag = 'scoped memory for tpu_custom_call.1']
    #allocation4 [shape = 's32[2]{0}', space=sflag, size = 0x8, scoped, tag = 'scoped memory for tpu_custom_call.1']
    #allocation5 [shape = 'u8[884736]{0}', space=vmem, size = 0xd8000, scoped, tag = 'input window, operand 3, single buffered']
    #allocation6 [shape = 's32[1]{0}', space=sflag, size = 0x4, scoped, tag = 'scoped memory for tpu_custom_call.1']
    #allocation7 [shape = 'u8[131072]{0}', space=vmem, size = 0x20000, scoped, tag = 'input window, operand 4, single buffered']
    #allocation8 [shape = 'u8[32768]{0}', space=vmem, size = 0x8000, scoped, tag = 'output window, operand 0']
    %11 = vsyncpa [#allocation3], 0
    %12 = vsyncpa [#allocation6], 0
    %13 = vsyncpa [#allocation4], 0
    %s14 = scalar_lea.sflag [#allocation4], 1
    %15 = vsyncpa %s14, 0
    loop: start=0, step=1, limit=4
    $region2: #{tpu_custom_call.1} parent=1 // loop_pre_header
      _
    $region3: #{tpu_custom_call.1} parent=1 // loop_header
      %s17 = sphi 0, %s21
      %p18 = scmp.ge.s32.totalorder %s17, 4
      %s27 = sphi 0, %s29
      %s30 = sphi 0, %s27
      %s31 = sphi 0, %s30
      %s47 = sphi 0, %s31
      %s51 = sphi 0, %s51
      %s53 = sphi 0, %s51
      %s54 = sphi 0, %s53
      %s68 = sphi 0, %s54
      %s72 = sphi 0, %s72
      %s74 = sphi 0, %s72
      %s75 = sphi 0, %s74
      %s89 = sphi 0, %s75
      %s93 = sphi 0, %s93
      %s95 = sphi 0, %s93
      %s96 = sphi 0, %s95
      %s110 = sphi 0, %s96
      %s114 = sphi 0, %s114
      %s116 = sphi 0, %s114
      %s117 = sphi 0, %s116
      %s131 = sphi 0, %s117
      %s135 = sphi 0, %s135
      %s137 = sphi 0, %s135
      %s138 = sphi 0, %s137
      %s152 = sphi 0, %s138
      %s158 = sphi 0, %s160
      %s161 = sphi 0, %s158
      %s162 = sphi 0, %s161
      %s178 = sphi 0, %s162
    $region4: #{tpu_custom_call.1} parent=1 // loop_header_branch
      %20 = sbr.rel (%p18) target = $region8
    $region5: #{tpu_custom_call.1} parent=1 // loop_body
      %s22 = ssub.s32 %s17, 1
      %s23 = ssub.s32 %s17, 2
      %s24 = sadd.s32 %s17, 1
      %s25 = ssub.s32 %s17, %s24
      %p26 = scmp.eq.s32.totalorder %s25, 0
      %s28 = sadd.s32 %s27, 1
      %s29 = scalar_select %p26, %s27, %s28
      %p32 = pneg %p26
      %p33 = scmp.eq.s32.totalorder %s17, 1
      %p34 = por %p32, %p33
      %p35 = scmp.ne.s32.totalorder %s27, %s30
      %p36 = scmp.eq.s32.totalorder %s17, 0
      %p37 = por %p35, %p36
      %p38 = scmp.ne.s32.totalorder %s27, %s30
      %p39 = scmp.eq.s32.totalorder %s22, 1
      %p40 = por %p38, %p39
      %p41 = scmp.ne.s32.totalorder %s30, %s31
      %p42 = scmp.eq.s32.totalorder %s22, 0
      %p43 = por %p41, %p42
      %p44 = scmp.ne.s32.totalorder %s30, %s31
      %p45 = scmp.eq.s32.totalorder %s23, 1
      %p46 = por %p44, %p45
      %p48 = scmp.ne.s32.totalorder %s31, %s47
      %p49 = scmp.eq.s32.totalorder %s23, 0
      %p50 = por %p48, %p49
      %s52 = sadd.s32 %s51, 1
      %p55 = scmp.eq.s32.totalorder %s17, 1
      %p56 = scmp.ne.s32.totalorder %s51, %s53
      %p57 = scmp.eq.s32.totalorder %s17, 0
      %p58 = por %p56, %p57
      %p59 = scmp.ne.s32.totalorder %s51, %s53
      %p60 = scmp.eq.s32.totalorder %s22, 1
      %p61 = por %p59, %p60
      %p62 = scmp.ne.s32.totalorder %s53, %s54
      %p63 = scmp.eq.s32.totalorder %s22, 0
      %p64 = por %p62, %p63
      %p65 = scmp.ne.s32.totalorder %s53, %s54
      %p66 = scmp.eq.s32.totalorder %s23, 1
      %p67 = por %p65, %p66
      %p69 = scmp.ne.s32.totalorder %s54, %s68
      %p70 = scmp.eq.s32.totalorder %s23, 0
      %p71 = por %p69, %p70
      %s73 = sadd.s32 %s72, 1
      %p76 = scmp.eq.s32.totalorder %s17, 1
      %p77 = scmp.ne.s32.totalorder %s72, %s74
      %p78 = scmp.eq.s32.totalorder %s17, 0
      %p79 = por %p77, %p78
      %p80 = scmp.ne.s32.totalorder %s72, %s74
      %p81 = scmp.eq.s32.totalorder %s22, 1
      %p82 = por %p80, %p81
      %p83 = scmp.ne.s32.totalorder %s74, %s75
      %p84 = scmp.eq.s32.totalorder %s22, 0
      %p85 = por %p83, %p84
      %p86 = scmp.ne.s32.totalorder %s74, %s75
      %p87 = scmp.eq.s32.totalorder %s23, 1
      %p88 = por %p86, %p87
      %p90 = scmp.ne.s32.totalorder %s75, %s89
      %p91 = scmp.eq.s32.totalorder %s23, 0
      %p92 = por %p90, %p91
      %s94 = sadd.s32 %s93, 1
      %p97 = scmp.eq.s32.totalorder %s17, 1
      %p98 = scmp.ne.s32.totalorder %s93, %s95
      %p99 = scmp.eq.s32.totalorder %s17, 0
      %p100 = por %p98, %p99
      %p101 = scmp.ne.s32.totalorder %s93, %s95
      %p102 = scmp.eq.s32.totalorder %s22, 1
      %p103 = por %p101, %p102
      %p104 = scmp.ne.s32.totalorder %s95, %s96
      %p105 = scmp.eq.s32.totalorder %s22, 0
      %p106 = por %p104, %p105
      %p107 = scmp.ne.s32.totalorder %s95, %s96
      %p108 = scmp.eq.s32.totalorder %s23, 1
      %p109 = por %p107, %p108
      %p111 = scmp.ne.s32.totalorder %s96, %s110
      %p112 = scmp.eq.s32.totalorder %s23, 0
      %p113 = por %p111, %p112
      %s115 = sadd.s32 %s114, 1
      %p118 = scmp.eq.s32.totalorder %s17, 1
      %p119 = scmp.ne.s32.totalorder %s114, %s116
      %p120 = scmp.eq.s32.totalorder %s17, 0
      %p121 = por %p119, %p120
      %p122 = scmp.ne.s32.totalorder %s114, %s116
      %p123 = scmp.eq.s32.totalorder %s22, 1
      %p124 = por %p122, %p123
      %p125 = scmp.ne.s32.totalorder %s116, %s117
      %p126 = scmp.eq.s32.totalorder %s22, 0
      %p127 = por %p125, %p126
      %p128 = scmp.ne.s32.totalorder %s116, %s117
      %p129 = scmp.eq.s32.totalorder %s23, 1
      %p130 = por %p128, %p129
      %p132 = scmp.ne.s32.totalorder %s117, %s131
      %p133 = scmp.eq.s32.totalorder %s23, 0
      %p134 = por %p132, %p133
      %s136 = sadd.s32 %s135, 1
      %p139 = scmp.eq.s32.totalorder %s17, 1
      %p140 = scmp.ne.s32.totalorder %s135, %s137
      %p141 = scmp.eq.s32.totalorder %s17, 0
      %p142 = por %p140, %p141
      %p143 = scmp.ne.s32.totalorder %s135, %s137
      %p144 = scmp.eq.s32.totalorder %s22, 1
      %p145 = por %p143, %p144
      %p146 = scmp.ne.s32.totalorder %s137, %s138
      %p147 = scmp.eq.s32.totalorder %s22, 0
      %p148 = por %p146, %p147
      %p149 = scmp.ne.s32.totalorder %s137, %s138
      %p150 = scmp.eq.s32.totalorder %s23, 1
      %p151 = por %p149, %p150
      %p153 = scmp.ne.s32.totalorder %s138, %s152
      %p154 = scmp.eq.s32.totalorder %s23, 0
      %p155 = por %p153, %p154
      %s156 = ssub.s32 %s17, %s24
      %p157 = scmp.eq.s32.totalorder %s156, 0
      %s159 = sadd.s32 %s158, 1
      %s160 = scalar_select %p157, %s158, %s159
      %p163 = pneg %p157
      %p164 = scmp.eq.s32.totalorder %s17, 1
      %p165 = por %p163, %p164
      %p166 = scmp.ne.s32.totalorder %s158, %s161
      %p167 = scmp.eq.s32.totalorder %s17, 0
      %p168 = por %p166, %p167
      %p169 = scmp.ne.s32.totalorder %s158, %s161
      %p170 = scmp.eq.s32.totalorder %s22, 1
      %p171 = por %p169, %p170
      %p172 = scmp.ne.s32.totalorder %s161, %s162
      %p173 = scmp.eq.s32.totalorder %s22, 0
      %p174 = por %p172, %p173
      %p175 = scmp.ne.s32.totalorder %s161, %s162
      %p176 = scmp.eq.s32.totalorder %s23, 1
      %p177 = por %p175, %p176
      %p179 = scmp.ne.s32.totalorder %s162, %s178
      %p180 = scmp.eq.s32.totalorder %s23, 0
      %p181 = por %p179, %p180
      %p182 = scmp.le.s32.totalorder 1, %s17
      %p183 = scmp.lt.s32.totalorder %s17, 3
      %p184 = pnand %p182, %p183
      %p185 = pneg %p184
      // Predicated region
      $region9: #{tpu_custom_call.1} parent=5 // pred_check
        _
      $region10: #{tpu_custom_call.1} parent=5 // pred_check_branch
        %187 = sbr.rel (%p184) target = $region12
      $region11: #{tpu_custom_call.1} parent=5 // pred_region
        %s188 = ssub.s32 %s17, 1
        // Predicated region
        $region13: #{tpu_custom_call.1} parent=11 // pred_check
          %p189 = pneg %p64
        $region14: #{tpu_custom_call.1} parent=11 // pred_check_branch
          %191 = sbr.rel (%p189) target = $region16
        $region15: #{tpu_custom_call.1} parent=11 // pred_region
          %s193 = ssub.s32 13824, 13824
          %194 = vsyncadd [#allocation3], %s193
          %s195 = sshll.u32 [#allocation2], 4
          %s196 = int_to_ptr.vmem [resolvable:$true] %s195
          %201 = dma.hbm_to_vmem [thread:$0]  %s1, 13824, %s196, [#allocation3], 256, 256, 16
        $region16: #{tpu_custom_call.1} parent=11 // pred_fallthru
          _
        // Predicated region
        $region17: #{tpu_custom_call.1} parent=11 // pred_check
          %p202 = pneg %p85
        $region18: #{tpu_custom_call.1} parent=11 // pred_check_branch
          %204 = sbr.rel (%p202) target = $region20
        $region19: #{tpu_custom_call.1} parent=11 // pred_region
          _
        $region20: #{tpu_custom_call.1} parent=11 // pred_fallthru
          _
        // Predicated region
        $region21: #{tpu_custom_call.1} parent=11 // pred_check
          %p205 = pneg %p106
        $region22: #{tpu_custom_call.1} parent=11 // pred_check_branch
          %207 = sbr.rel (%p205) target = $region24
        $region23: #{tpu_custom_call.1} parent=11 // pred_region
          %s209 = ssub.s32 27648, 27648
          %210 = vsyncadd [#allocation6], %s209
          %s211 = sshll.u32 [#allocation5], 4
          %s212 = int_to_ptr.vmem [resolvable:$true] %s211
          %217 = dma.hbm_to_vmem [thread:$0]  %s3, 27648, %s212, [#allocation6], 256, 256, 16
        $region24: #{tpu_custom_call.1} parent=11 // pred_fallthru
          _
        // Predicated region
        $region25: #{tpu_custom_call.1} parent=11 // pred_check
          %p218 = pneg %p127
        $region26: #{tpu_custom_call.1} parent=11 // pred_check_branch
          %220 = sbr.rel (%p218) target = $region28
        $region27: #{tpu_custom_call.1} parent=11 // pred_region
          %s222 = ssub.s32 4096, 4096
          %223 = vsyncadd [#allocation6], %s222
          %s224 = sshll.u32 [#allocation7], 4
          %s225 = int_to_ptr.vmem [resolvable:$true] %s224
          %230 = dma.hbm_to_vmem [thread:$0]  %s4, 4096, %s225, [#allocation6], 256, 256, 16
        $region28: #{tpu_custom_call.1} parent=11 // pred_fallthru
          _
        // Predicated region
        $region29: #{tpu_custom_call.1} parent=11 // pred_check
          %p231 = pneg %p148
        $region30: #{tpu_custom_call.1} parent=11 // pred_check_branch
          %233 = sbr.rel (%p231) target = $region32
        $region31: #{tpu_custom_call.1} parent=11 // pred_region
          _
        $region32: #{tpu_custom_call.1} parent=11 // pred_fallthru
          _
      $region12: #{tpu_custom_call.1} parent=5 // pred_fallthru
        _
      %p234 = scmp.lt.s32.totalorder %s17, 2
      // Predicated region
      $region33: #{tpu_custom_call.1} parent=5 // pred_check
        %p235 = pneg %p234
      $region34: #{tpu_custom_call.1} parent=5 // pred_check_branch
        %237 = sbr.rel (%p235) target = $region36
      $region35: #{tpu_custom_call.1} parent=5 // pred_region
        // Predicated region
        $region37: #{tpu_custom_call.1} parent=35 // pred_check
          %p238 = pneg %p37
        $region38: #{tpu_custom_call.1} parent=35 // pred_check_branch
          %240 = sbr.rel (%p238) target = $region40
        $region39: #{tpu_custom_call.1} parent=35 // pred_region
          %p241 = scmp.lt.s32.totalorder %s17, 1
          %s242 = scalar_select %p241, %s17, 1
          %s243 = smul.addr %s242, 6
          %s244 = smul.addr %s243, 8
          %s245 = scalar_lea.vmem %s0, %s244
        $region40: #{tpu_custom_call.1} parent=35 // pred_fallthru
          _
      $region36: #{tpu_custom_call.1} parent=5 // pred_fallthru
        _
      %p246 = scmp.le.s32.totalorder 1, %s17
      %p247 = scmp.lt.s32.totalorder %s17, 3
      %p248 = pnand %p246, %p247
      %p249 = pneg %p248
      // Predicated region
      $region41: #{tpu_custom_call.1} parent=5 // pred_check
        _
      $region42: #{tpu_custom_call.1} parent=5 // pred_check_branch
        %251 = sbr.rel (%p248) target = $region44
      $region43: #{tpu_custom_call.1} parent=5 // pred_region
        %s252 = ssub.s32 %s17, 1
        // Predicated region
        $region45: #{tpu_custom_call.1} parent=43 // pred_check
          %p253 = pneg %p64
        $region46: #{tpu_custom_call.1} parent=43 // pred_check_branch
          %255 = sbr.rel (%p253) target = $region48
        $region47: #{tpu_custom_call.1} parent=43 // pred_region
          %256 = dma.done [#allocation3], 13824
        $region48: #{tpu_custom_call.1} parent=43 // pred_fallthru
          _
        // Predicated region
        $region49: #{tpu_custom_call.1} parent=43 // pred_check
          %p257 = pneg %p106
        $region50: #{tpu_custom_call.1} parent=43 // pred_check_branch
          %259 = sbr.rel (%p257) target = $region52
        $region51: #{tpu_custom_call.1} parent=43 // pred_region
          %260 = dma.done [#allocation6], 27648
        $region52: #{tpu_custom_call.1} parent=43 // pred_fallthru
          _
        // Predicated region
        $region53: #{tpu_custom_call.1} parent=43 // pred_check
          %p261 = pneg %p127
        $region54: #{tpu_custom_call.1} parent=43 // pred_check_branch
          %263 = sbr.rel (%p261) target = $region56
        $region55: #{tpu_custom_call.1} parent=43 // pred_region
          %264 = dma.done [#allocation6], 4096
        $region56: #{tpu_custom_call.1} parent=43 // pred_fallthru
          _
        %p265 = scmp.lt.s32.totalorder %s22, 1
        %s266 = scalar_select %p265, %s22, 1
        %s267 = smul.addr %s266, 6
        %s268 = smul.addr %s267, 8
        %s269 = scalar_lea.vmem %s0, %s268
        %p270 = pneg %p43
        %p271 = pneg %p40
        %p272 = pneg %p64
        %p273 = pneg %p61
        %p274 = pneg %p85
        %p275 = pneg %p82
        %p276 = pneg %p106
        %p277 = pneg %p103
        %p278 = pneg %p127
        %p279 = pneg %p124
        %p280 = pneg %p148
        %p281 = pneg %p145
        %p282 = pneg %p174
        %p283 = pneg %p171
        %s284 = sand.u32 %s161, 1
        %s285 = scalar_lea.sflag [#allocation4], %s284
        %s286 = sand.u32 %s161, 1
        %s287 = smul.addr %s286, 32
        %s288 = scalar_lea.vmem [#allocation8], %s287
        %p289 = scmp.lt.s32.totalorder %s22, 1
        %s290 = scalar_select %p289, %s22, 1
        %s291 = smul.addr %s290, 6
        %s292 = smul.addr %s291, 8
        %s293 = scalar_lea.vmem %s0, %s292
        %v294 = vld [vmem:[%s293] sm:$0xff]
        %v295 = vld [vmem:[%s293 + $0x8] sm:$0xff]
        %v296 = vld [vmem:[%s293 + $0x10] sm:$0xff]
        %v297 = vld [vmem:[%s293 + $0x18] sm:$0xff]
        %v298 = vld [vmem:[%s293 + $0x20] sm:$0x3]
        %v299 = vld [vmem:[%s293 + $0x28] sm:$0x3]
        %vm306 = vcmask 1046528
        %v307 = vrot.slane %v294, 1
        %v308 = vrot.slane %v296, 1
        %v309 = vsel %vm306, %v307, %v308
        %v310 = vrot.slane %v295, 1
        %v311 = vrot.slane %v297, 1
        %v312 = vsel %vm306, %v310, %v311
        %v313 = vrot.slane %v298, 1
        %v314 = vsel %vm306, %v308, %v313
        %v315 = vrot.slane %v299, 1
        %v316 = vsel %vm306, %v311, %v315
        %317 = vrot.lane.b32.xlu0 %v309, 16
        %v318 = vpop.permute.xlu0 %317
        %319 = vrot.lane.b32.xlu0 %v312, 16
        %v320 = vpop.permute.xlu0 %319
        %321 = vrot.lane.b32.xlu0 %v314, 16
        %v322 = vpop.permute.xlu0 %321
        %323 = vrot.lane.b32.xlu0 %v316, 16
        %v324 = vpop.permute.xlu0 %323
        %vm325 = vcmask 130048
        %v326 = vsel %vm325, %v318, %v320
        %v327 = vsel %vm325, %v322, %v324
        %vm332 = vcmask 1045504
        %v333 = vrot.slane %v294, 2
        %v334 = vrot.slane %v296, 2
        %v335 = vsel %vm332, %v333, %v334
        %v336 = vrot.slane %v295, 2
        %v337 = vrot.slane %v297, 2
        %v338 = vsel %vm332, %v336, %v337
        %v339 = vrot.slane %v298, 2
        %v340 = vsel %vm332, %v334, %v339
        %v341 = vrot.slane %v299, 2
        %v342 = vsel %vm332, %v337, %v341
        %343 = vrot.lane.b32.xlu0 %v335, 32
        %v344 = vpop.permute.xlu0 %343
        %345 = vrot.lane.b32.xlu0 %v338, 32
        %v346 = vpop.permute.xlu0 %345
        %347 = vrot.lane.b32.xlu0 %v340, 32
        %v348 = vpop.permute.xlu0 %347
        %349 = vrot.lane.b32.xlu0 %v342, 32
        %v350 = vpop.permute.xlu0 %349
        %vm351 = vcmask 261120
        %v352 = vsel %vm351, %v344, %v346
        %v353 = vsel %vm351, %v348, %v350
        %v356 = vsel %vm325, %v295, %v318
        %v357 = vsel %vm325, %v297, %v322
        %v358 = vsel %vm351, %v326, %v344
        %v359 = vsel %vm351, %v327, %v348
        %v360 = vld [vmem:[#allocation2] sm:$0xff]
        %v361 = vld [vmem:[#allocation2 + $0x8] sm:$0xff]
        %v362 = vld [vmem:[#allocation2 + $0x10] sm:$0xff]
        %v363 = vld [vmem:[#allocation2 + $0x18] sm:$0xff]
        %v364 = vld [vmem:[#allocation2 + $0x20] sm:$0xff]
        %v365 = vld [vmem:[#allocation2 + $0x28] sm:$0xff]
        %v366 = vld [vmem:[#allocation2 + $0x30] sm:$0xff]
        %v367 = vld [vmem:[#allocation2 + $0x38] sm:$0xff]
        %v368 = vld [vmem:[#allocation2 + $0x40] sm:$0xff]
        %v369 = vld [vmem:[#allocation2 + $0x48] sm:$0xff]
        %v370 = vld [vmem:[#allocation2 + $0x50] sm:$0xff]
        %v371 = vld [vmem:[#allocation2 + $0x58] sm:$0xff]
        %v372 = vld [vmem:[#allocation2 + $0x60] sm:$0xff]
        %v373 = vld [vmem:[#allocation2 + $0x68] sm:$0xff]
        %v374 = vld [vmem:[#allocation2 + $0x70] sm:$0xff]
        %v375 = vld [vmem:[#allocation2 + $0x78] sm:$0xff]
        %v376 = vld [vmem:[#allocation2 + $0x80] sm:$0xff]
        %v377 = vld [vmem:[#allocation2 + $0x88] sm:$0xff]
        %v378 = vld [vmem:[#allocation2 + $0x90] sm:$0xff]
        %v379 = vld [vmem:[#allocation2 + $0x98] sm:$0xff]
        %v380 = vld [vmem:[#allocation2 + $0xa0] sm:$0xff]
        %v381 = vld [vmem:[#allocation2 + $0xa8] sm:$0xff]
        %v382 = vld [vmem:[#allocation2 + $0xb0] sm:$0xff]
        %v383 = vld [vmem:[#allocation2 + $0xb8] sm:$0xff]
        %v384 = vld [vmem:[#allocation2 + $0xc0] sm:$0xff]
        %v385 = vld [vmem:[#allocation2 + $0xc8] sm:$0xff]
        %v386 = vld [vmem:[#allocation2 + $0xd0] sm:$0xff]
        %v387 = vld [vmem:[#allocation2 + $0xd8] sm:$0xff]
        %v388 = vld [vmem:[#allocation2 + $0xe0] sm:$0xff]
        %v389 = vld [vmem:[#allocation2 + $0xe8] sm:$0xff]
        %v390 = vld [vmem:[#allocation2 + $0xf0] sm:$0xff]
        %v391 = vld [vmem:[#allocation2 + $0xf8] sm:$0xff]
        %v392 = vld [vmem:[#allocation2 + $0x100] sm:$0xff]
        %v393 = vld [vmem:[#allocation2 + $0x108] sm:$0xff]
        %v394 = vld [vmem:[#allocation2 + $0x110] sm:$0xff]
        %v395 = vld [vmem:[#allocation2 + $0x118] sm:$0xff]
        %v396 = vld [vmem:[#allocation2 + $0x120] sm:$0xff]
        %v397 = vld [vmem:[#allocation2 + $0x128] sm:$0xff]
        %v398 = vld [vmem:[#allocation2 + $0x130] sm:$0xff]
        %v399 = vld [vmem:[#allocation2 + $0x138] sm:$0xff]
        %v400 = vld [vmem:[#allocation2 + $0x140] sm:$0xff]
        %v401 = vld [vmem:[#allocation2 + $0x148] sm:$0xff]
        %v402 = vld [vmem:[#allocation2 + $0x150] sm:$0xff]
        %v403 = vld [vmem:[#allocation2 + $0x158] sm:$0xff]
        %v404 = vld [vmem:[#allocation2 + $0x160] sm:$0xff]
        %v405 = vld [vmem:[#allocation2 + $0x168] sm:$0xff]
        %v406 = vld [vmem:[#allocation2 + $0x170] sm:$0xff]
        %v407 = vld [vmem:[#allocation2 + $0x178] sm:$0xff]
        %v408 = vld [vmem:[#allocation2 + $0x180] sm:$0xff]
        %v409 = vld [vmem:[#allocation2 + $0x188] sm:$0xff]
        %v410 = vld [vmem:[#allocation2 + $0x190] sm:$0xff]
        %v411 = vld [vmem:[#allocation2 + $0x198] sm:$0xff]
        %v412 = vld [vmem:[#allocation2 + $0x1a0] sm:$0xff]
        %v413 = vld [vmem:[#allocation2 + $0x1a8] sm:$0xff]
        %v414 = vld [vmem:[#allocation2 + $0x1b0] sm:$0xff]
        %v415 = vld [vmem:[#allocation2 + $0x1b8] sm:$0xff]
        %v416 = vld [vmem:[#allocation2 + $0x1c0] sm:$0xff]
        %v417 = vld [vmem:[#allocation2 + $0x1c8] sm:$0xff]
        %v418 = vld [vmem:[#allocation2 + $0x1d0] sm:$0xff]
        %v419 = vld [vmem:[#allocation2 + $0x1d8] sm:$0xff]
        %v420 = vld [vmem:[#allocation2 + $0x1e0] sm:$0xff]
        %v421 = vld [vmem:[#allocation2 + $0x1e8] sm:$0xff]
        %v422 = vld [vmem:[#allocation2 + $0x1f0] sm:$0xff]
        %v423 = vld [vmem:[#allocation2 + $0x1f8] sm:$0xff]
        %v424 = vld [vmem:[#allocation2 + $0x200] sm:$0xff]
        %v425 = vld [vmem:[#allocation2 + $0x208] sm:$0xff]
        %v426 = vld [vmem:[#allocation2 + $0x210] sm:$0xff]
        %v427 = vld [vmem:[#allocation2 + $0x218] sm:$0xff]
        %v428 = vld [vmem:[#allocation2 + $0x220] sm:$0xff]
        %v429 = vld [vmem:[#allocation2 + $0x228] sm:$0xff]
        %v430 = vld [vmem:[#allocation2 + $0x230] sm:$0xff]
        %v431 = vld [vmem:[#allocation2 + $0x238] sm:$0xff]
        %v432 = vld [vmem:[#allocation2 + $0x240] sm:$0xff]
        %v433 = vld [vmem:[#allocation2 + $0x248] sm:$0xff]
        %v434 = vld [vmem:[#allocation2 + $0x250] sm:$0xff]
        %v435 = vld [vmem:[#allocation2 + $0x258] sm:$0xff]
        %v436 = vld [vmem:[#allocation2 + $0x260] sm:$0xff]
        %v437 = vld [vmem:[#allocation2 + $0x268] sm:$0xff]
        %v438 = vld [vmem:[#allocation2 + $0x270] sm:$0xff]
        %v439 = vld [vmem:[#allocation2 + $0x278] sm:$0xff]
        %v440 = vld [vmem:[#allocation2 + $0x280] sm:$0xff]
        %v441 = vld [vmem:[#allocation2 + $0x288] sm:$0xff]
        %v442 = vld [vmem:[#allocation2 + $0x290] sm:$0xff]
        %v443 = vld [vmem:[#allocation2 + $0x298] sm:$0xff]
        %v444 = vld [vmem:[#allocation2 + $0x2a0] sm:$0xff]
        %v445 = vld [vmem:[#allocation2 + $0x2a8] sm:$0xff]
        %v446 = vld [vmem:[#allocation2 + $0x2b0] sm:$0xff]
        %v447 = vld [vmem:[#allocation2 + $0x2b8] sm:$0xff]
        %v448 = vld [vmem:[#allocation2 + $0x2c0] sm:$0xff]
        %v449 = vld [vmem:[#allocation2 + $0x2c8] sm:$0xff]
        %v450 = vld [vmem:[#allocation2 + $0x2d0] sm:$0xff]
        %v451 = vld [vmem:[#allocation2 + $0x2d8] sm:$0xff]
        %v452 = vld [vmem:[#allocation2 + $0x2e0] sm:$0xff]
        %v453 = vld [vmem:[#allocation2 + $0x2e8] sm:$0xff]
        %v454 = vld [vmem:[#allocation2 + $0x2f0] sm:$0xff]
        %v455 = vld [vmem:[#allocation2 + $0x2f8] sm:$0xff]
        %v456 = vld [vmem:[#allocation2 + $0x300] sm:$0xff]
        %v457 = vld [vmem:[#allocation2 + $0x308] sm:$0xff]
        %v458 = vld [vmem:[#allocation2 + $0x310] sm:$0xff]
        %v459 = vld [vmem:[#allocation2 + $0x318] sm:$0xff]
        %v460 = vld [vmem:[#allocation2 + $0x320] sm:$0xff]
        %v461 = vld [vmem:[#allocation2 + $0x328] sm:$0xff]
        %v462 = vld [vmem:[#allocation2 + $0x330] sm:$0xff]
        %v463 = vld [vmem:[#allocation2 + $0x338] sm:$0xff]
        %v464 = vld [vmem:[#allocation2 + $0x340] sm:$0xff]
        %v465 = vld [vmem:[#allocation2 + $0x348] sm:$0xff]
        %v466 = vld [vmem:[#allocation2 + $0x350] sm:$0xff]
        %v467 = vld [vmem:[#allocation2 + $0x358] sm:$0xff]
        %v468 = vld [vmem:[%s2] sm:$0x3]
        %v470 = vlaneseq
        %v471 = vshrl.u32 %v470, 7
        %v472 = vsub.s32 0, %v471
        %v473 = vrot.slane %v468, %v472
        %v474 = vlaneseq
        %v475 = vshrl.u32 %v474, 7
        %v476 = vsub.s32 1, %v475
        %v477 = vrot.slane %v468, %v476
        %vm480 = vcmask 392192
        %v481 = vsel %vm480, %v352, 0
        %v483 = vsel %vm480, %v353, 0
        %485 = vmatprep.subr.mxu0 %v361
        %486 = vmatpush1.msra.mxu0 %v360
        %487 = vmatprep.subr.mxu0 %v363
        %488 = vmatpush1.msra.mxu0 %v362
        %489 = vmatprep.subr.mxu0 %v365
        %490 = vmatpush1.msra.mxu0 %v364
        %491 = vmatprep.subr.mxu0 %v367
        %492 = vmatpush1.msra.mxu0 %v366
        %493 = vmatprep.subr.mxu0 %v369
        %494 = vmatpush1.msra.mxu0 %v368
        %495 = vmatprep.subr.mxu0 %v371
        %496 = vmatpush1.msra.mxu0 %v370
        %497 = vmatprep.subr.mxu0 %v373
        %498 = vmatpush1.msra.mxu0 %v372
        %499 = vmatprep.subr.mxu0 %v375
        %500 = vmatpush1.msra.mxu0 %v374
        %501 = vmatprep.subr.mxu0 %v377
        %502 = vmatpush1.msra.mxu0 %v376
        %503 = vmatprep.subr.mxu0 %v379
        %504 = vmatpush1.msra.mxu0 %v378
        %505 = vmatprep.subr.mxu0 %v381
        %506 = vmatpush1.msra.mxu0 %v380
        %507 = vmatprep.subr.mxu0 %v383
        %508 = vmatpush1.msra.mxu0 %v382
        %509 = vmatprep.subr.mxu0 %v385
        %510 = vmatpush1.msra.mxu0 %v384
        %511 = vmatprep.subr.mxu0 %v387
        %512 = vmatpush1.msra.mxu0 %v386
        %513 = vmatprep.subr.mxu0 %v389
        %514 = vmatpush1.msra.mxu0 %v388
        %515 = vmatprep.subr.mxu0 %v391
        %516 = vmatpush1.msra.mxu0 %v390
        %517 = vmatprep.subr.mxu0 %v393
        %518 = vmatpush1.msra.mxu0 %v392
        %519 = vmatprep.subr.mxu0 %v395
        %520 = vmatpush1.msra.mxu0 %v394
        %521 = vmatprep.subr.mxu0 %v397
        %522 = vmatpush1.msra.mxu0 %v396
        %523 = vmatprep.subr.mxu0 %v399
        %524 = vmatpush1.msra.mxu0 %v398
        %525 = vmatprep.subr.mxu0 %v401
        %526 = vmatpush1.msra.mxu0 %v400
        %527 = vmatprep.subr.mxu0 %v403
        %528 = vmatpush1.msra.mxu0 %v402
        %529 = vmatprep.subr.mxu0 %v405
        %530 = vmatpush1.msra.mxu0 %v404
        %531 = vmatprep.subr.mxu0 %v407
        %532 = vmatpush1.msra.mxu0 %v406
        %533 = vmatprep.subr.mxu0 %v409
        %534 = vmatpush1.msra.mxu0 %v408
        %535 = vmatprep.subr.mxu0 %v411
        %536 = vmatpush1.msra.mxu0 %v410
        %537 = vmatprep.subr.mxu0 %v413
        %538 = vmatpush1.msra.mxu0 %v412
        %539 = vmatprep.subr.mxu0 %v415
        %540 = vmatpush1.msra.mxu0 %v414
        %541 = vmatprep.subr.mxu0 %v417
        %542 = vmatpush1.msra.mxu0 %v416
        %543 = vmatprep.subr.mxu0 %v419
        %544 = vmatpush1.msra.mxu0 %v418
        %545 = vmatprep.subr.mxu0 %v421
        %546 = vmatpush1.msra.mxu0 %v420
        %547 = vmatprep.subr.mxu0 %v423
        %548 = vmatpush1.msra.mxu0 %v422
        %549 = vmatprep.mubr.f32.mxu0 %v356
        %550 = vmatmul.mubr.f32.gmra.mrb[0].mxu0 %v294
        %v551 = vpop.f32.mrb[0].mxu0
        %v552 = vadd.f32 %v473, %v551
        %v553 = vpop.f32.mrb[0].mxu0
        %v554 = vadd.f32 %v477, %v553
        %555 = vmatprep.mubr.f32.mxu0 %v357
        %556 = vmatmul.mubr.f32.gmra.mrb[0].mxu0 %v296
        %v557 = vpop.f32.mrb[0].mxu0
        %v558 = vadd.f32 %v473, %v557
        %v559 = vpop.f32.mrb[0].mxu0
        %v560 = vadd.f32 %v477, %v559
        %561 = vdwg.mxu0
        %562 = vmatprep.subr.mxu0 %v425
        %563 = vmatpush1.msra.mxu0 %v424
        %564 = vmatprep.subr.mxu0 %v427
        %565 = vmatpush1.msra.mxu0 %v426
        %566 = vmatprep.subr.mxu0 %v429
        %567 = vmatpush1.msra.mxu0 %v428
        %568 = vmatprep.subr.mxu0 %v431
        %569 = vmatpush1.msra.mxu0 %v430
        %570 = vmatprep.subr.mxu0 %v433
        %571 = vmatpush1.msra.mxu0 %v432
        %572 = vmatprep.subr.mxu0 %v435
        %573 = vmatpush1.msra.mxu0 %v434
        %574 = vmatprep.subr.mxu0 %v437
        %575 = vmatpush1.msra.mxu0 %v436
        %576 = vmatprep.subr.mxu0 %v439
        %577 = vmatpush1.msra.mxu0 %v438
        %578 = vmatprep.subr.mxu0 %v441
        %579 = vmatpush1.msra.mxu0 %v440
        %580 = vmatprep.subr.mxu0 %v443
        %581 = vmatpush1.msra.mxu0 %v442
        %582 = vmatprep.subr.mxu0 %v445
        %583 = vmatpush1.msra.mxu0 %v444
        %584 = vmatprep.subr.mxu0 %v447
        %585 = vmatpush1.msra.mxu0 %v446
        %586 = vmatprep.subr.mxu0 %v449
        %587 = vmatpush1.msra.mxu0 %v448
        %588 = vmatprep.subr.mxu0 %v451
        %589 = vmatpush1.msra.mxu0 %v450
        %590 = vmatprep.subr.mxu0 %v453
        %591 = vmatpush1.msra.mxu0 %v452
        %592 = vmatprep.subr.mxu0 %v455
        %593 = vmatpush1.msra.mxu0 %v454
        %594 = vmatprep.subr.mxu0 %v457
        %595 = vmatpush1.msra.mxu0 %v456
        %596 = vmatprep.subr.mxu0 %v459
        %597 = vmatpush1.msra.mxu0 %v458
        %598 = vmatprep.subr.mxu0 %v461
        %599 = vmatpush1.msra.mxu0 %v460
        %600 = vmatprep.subr.mxu0 %v463
        %601 = vmatpush1.msra.mxu0 %v462
        %602 = vmatprep.subr.mxu0 %v465
        %603 = vmatpush1.msra.mxu0 %v464
        %604 = vmatprep.subr.mxu0 %v467
        %605 = vmatpush1.msra.mxu0 %v466
        %606 = vmatprep.subr.mxu0 0.0
        %607 = vmatpush1.msra.mxu0 0.0
        %608 = vmatprep.subr.mxu0 0.0
        %609 = vmatpush1.msra.mxu0 0.0
        %610 = vmatprep.subr.mxu0 0.0
        %611 = vmatpush1.msra.mxu0 0.0
        %612 = vmatprep.subr.mxu0 0.0
        %613 = vmatpush1.msra.mxu0 0.0
        %614 = vmatprep.subr.mxu0 0.0
        %615 = vmatpush1.msra.mxu0 0.0
        %616 = vmatprep.subr.mxu0 0.0
        %617 = vmatpush1.msra.mxu0 0.0
        %618 = vmatprep.subr.mxu0 0.0
        %619 = vmatpush1.msra.mxu0 0.0
        %620 = vmatprep.subr.mxu0 0.0
        %621 = vmatpush1.msra.mxu0 0.0
        %622 = vmatprep.subr.mxu0 0.0
        %623 = vmatpush1.msra.mxu0 0.0
        %624 = vmatprep.subr.mxu0 0.0
        %625 = vmatpush1.msra.mxu0 0.0
        %626 = vmatprep.mubr.f32.mxu0 %v481
        %627 = vmatmul.mubr.f32.gmra.mrb[0].mxu0 %v358
        %v628 = vpop.f32.mrb[0].mxu0
        %v629 = vadd.f32 %v552, %v628
        %v630 = vpop.f32.mrb[0].mxu0
        %v631 = vadd.f32 %v554, %v630
        %632 = vmatprep.mubr.f32.mxu0 %v483
        %633 = vmatmul.mubr.f32.gmra.mrb[0].mxu0 %v359
        %v634 = vpop.f32.mrb[0].mxu0
        %v635 = vadd.f32 %v558, %v634
        %v636 = vpop.f32.mrb[0].mxu0
        %v637 = vadd.f32 %v560, %v636
        %638 = vdwg.mxu0
        %v639 = vmax.f32 %v629, 0.0
        %v640 = vmax.f32 %v631, 0.0
        %v641 = vmax.f32 %v635, 0.0
        %v642 = vmax.f32 %v637, 0.0
        %647 = vrot.lane.b32.xlu0 %v639, 16
        %v648 = vpop.permute.xlu0 %647
        %649 = vrot.lane.b32.xlu0 %v640, 16
        %v650 = vpop.permute.xlu0 %649
        %651 = vrot.lane.b32.xlu0 %v641, 16
        %v652 = vpop.permute.xlu0 %651
        %653 = vrot.lane.b32.xlu0 %v642, 16
        %v654 = vpop.permute.xlu0 %653
        %v655 = vsel %vm325, %v648, %v650
        %v656 = vsel %vm325, %v652, %v654
        %v661 = vsel %vm325, 0.0, %v648
        %v662 = vsel %vm325, 0.0, %v652
        %v663 = vsel %vm325, %v650, 0.0
        %v664 = vsel %vm325, %v654, 0.0
        %vm669 = vcmask 1040384
        %v670 = vrot.slane %v661, 7
        %v671 = vrot.slane %v655, 7
        %v672 = vrot.slane %v663, 7
        %v673 = vrot.slane %v662, 7
        %v674 = vsel %vm669, %v670, %v673
        %v675 = vrot.slane %v656, 7
        %v676 = vsel %vm669, %v671, %v675
        %v677 = vrot.slane %v664, 7
        %v678 = vsel %vm669, %v672, %v677
        %v688 = vsel %vm669, 0.0, %v670
        %v689 = vsel %vm669, 0.0, %v671
        %v690 = vsel %vm669, 0.0, %v672
        %v691 = vsel %vm669, %v673, 0.0
        %v692 = vsel %vm669, %v675, 0.0
        %v693 = vsel %vm669, %v677, 0.0
        %v700 = vrot.slane %v688, 1
        %v701 = vrot.slane %v674, 1
        %v702 = vsel %vm306, %v700, %v701
        %v703 = vrot.slane %v689, 1
        %v704 = vrot.slane %v676, 1
        %v705 = vsel %vm306, %v703, %v704
        %v706 = vrot.slane %v690, 1
        %v707 = vrot.slane %v678, 1
        %v708 = vsel %vm306, %v706, %v707
        %v709 = vrot.slane %v691, 1
        %v710 = vsel %vm306, %v701, %v709
        %v711 = vrot.slane %v692, 1
        %v712 = vsel %vm306, %v704, %v711
        %v713 = vrot.slane %v693, 1
        %v714 = vsel %vm306, %v707, %v713
        %715 = vrot.lane.b32.xlu0 %v702, 32
        %v716 = vpop.permute.xlu0 %715
        %717 = vrot.lane.b32.xlu0 %v705, 32
        %v718 = vpop.permute.xlu0 %717
        %719 = vrot.lane.b32.xlu0 %v708, 32
        %v720 = vpop.permute.xlu0 %719
        %721 = vrot.lane.b32.xlu0 %v710, 32
        %v722 = vpop.permute.xlu0 %721
        %723 = vrot.lane.b32.xlu0 %v712, 32
        %v724 = vpop.permute.xlu0 %723
        %725 = vrot.lane.b32.xlu0 %v714, 32
        %v726 = vpop.permute.xlu0 %725
        %v727 = vsel %vm351, %v716, %v718
        %v728 = vsel %vm351, %v718, %v720
        %v729 = vsel %vm351, %v722, %v724
        %v730 = vsel %vm351, %v724, %v726
        %v737 = vrot.slane %v688, 2
        %v738 = vrot.slane %v674, 2
        %v739 = vsel %vm332, %v737, %v738
        %v740 = vrot.slane %v689, 2
        %v741 = vrot.slane %v676, 2
        %v742 = vsel %vm332, %v740, %v741
        %v743 = vrot.slane %v690, 2
        %v744 = vrot.slane %v678, 2
        %v745 = vsel %vm332, %v743, %v744
        %v746 = vrot.slane %v691, 2
        %v747 = vsel %vm332, %v738, %v746
        %v748 = vrot.slane %v692, 2
        %v749 = vsel %vm332, %v741, %v748
        %v750 = vrot.slane %v693, 2
        %v751 = vsel %vm332, %v744, %v750
        %752 = vrot.lane.b32.xlu0 %v739, 64
        %v753 = vpop.permute.xlu0 %752
        %754 = vrot.lane.b32.xlu0 %v742, 64
        %v755 = vpop.permute.xlu0 %754
        %756 = vrot.lane.b32.xlu0 %v745, 64
        %v757 = vpop.permute.xlu0 %756
        %758 = vrot.lane.b32.xlu0 %v747, 64
        %v759 = vpop.permute.xlu0 %758
        %760 = vrot.lane.b32.xlu0 %v749, 64
        %v761 = vpop.permute.xlu0 %760
        %762 = vrot.lane.b32.xlu0 %v751, 64
        %v763 = vpop.permute.xlu0 %762
        %vm764 = vcmask 523264
        %v765 = vsel %vm764, %v753, %v755
        %v766 = vsel %vm764, %v755, %v757
        %v767 = vsel %vm764, %v759, %v761
        %v768 = vsel %vm764, %v761, %v763
        %v773 = vsel %vm351, %v690, %v716
        %v774 = vsel %vm351, %v678, %v722
        %v775 = vsel %vm764, %v728, %v753
        %v776 = vsel %vm764, %v730, %v759
        %v777 = vld [vmem:[#allocation5] sm:$0xff]
        %v778 = vld [vmem:[#allocation5 + $0x8] sm:$0xff]
        %v779 = vld [vmem:[#allocation5 + $0x10] sm:$0xff]
        %v780 = vld [vmem:[#allocation5 + $0x18] sm:$0xff]
        %v781 = vld [vmem:[#allocation5 + $0x20] sm:$0xff]
        %v782 = vld [vmem:[#allocation5 + $0x28] sm:$0xff]
        %v783 = vld [vmem:[#allocation5 + $0x30] sm:$0xff]
        %v784 = vld [vmem:[#allocation5 + $0x38] sm:$0xff]
        %v785 = vld [vmem:[#allocation5 + $0x40] sm:$0xff]
        %v786 = vld [vmem:[#allocation5 + $0x48] sm:$0xff]
        %v787 = vld [vmem:[#allocation5 + $0x50] sm:$0xff]
        %v788 = vld [vmem:[#allocation5 + $0x58] sm:$0xff]
        %v789 = vld [vmem:[#allocation5 + $0x60] sm:$0xff]
        %v790 = vld [vmem:[#allocation5 + $0x68] sm:$0xff]
        %v791 = vld [vmem:[#allocation5 + $0x70] sm:$0xff]
        %v792 = vld [vmem:[#allocation5 + $0x78] sm:$0xff]
        %v793 = vld [vmem:[#allocation5 + $0x80] sm:$0xff]
        %v794 = vld [vmem:[#allocation5 + $0x88] sm:$0xff]
        %v795 = vld [vmem:[#allocation5 + $0x90] sm:$0xff]
        %v796 = vld [vmem:[#allocation5 + $0x98] sm:$0xff]
        %v797 = vld [vmem:[#allocation5 + $0xa0] sm:$0xff]
        %v798 = vld [vmem:[#allocation5 + $0xa8] sm:$0xff]
        %v799 = vld [vmem:[#allocation5 + $0xb0] sm:$0xff]
        %v800 = vld [vmem:[#allocation5 + $0xb8] sm:$0xff]
        %v801 = vld [vmem:[#allocation5 + $0xc0] sm:$0xff]
        %v802 = vld [vmem:[#allocation5 + $0xc8] sm:$0xff]
        %v803 = vld [vmem:[#allocation5 + $0xd0] sm:$0xff]
        %v804 = vld [vmem:[#allocation5 + $0xd8] sm:$0xff]
        %v805 = vld [vmem:[#allocation5 + $0xe0] sm:$0xff]
        %v806 = vld [vmem:[#allocation5 + $0xe8] sm:$0xff]
        %v807 = vld [vmem:[#allocation5 + $0xf0] sm:$0xff]
        %v808 = vld [vmem:[#allocation5 + $0xf8] sm:$0xff]
        %v809 = vld [vmem:[#allocation5 + $0x100] sm:$0xff]
        %v810 = vld [vmem:[#allocation5 + $0x108] sm:$0xff]
        %v811 = vld [vmem:[#allocation5 + $0x110] sm:$0xff]
        %v812 = vld [vmem:[#allocation5 + $0x118] sm:$0xff]
        %v813 = vld [vmem:[#allocation5 + $0x120] sm:$0xff]
        %v814 = vld [vmem:[#allocation5 + $0x128] sm:$0xff]
        %v815 = vld [vmem:[#allocation5 + $0x130] sm:$0xff]
        %v816 = vld [vmem:[#allocation5 + $0x138] sm:$0xff]
        %v817 = vld [vmem:[#allocation5 + $0x140] sm:$0xff]
        %v818 = vld [vmem:[#allocation5 + $0x148] sm:$0xff]
        %v819 = vld [vmem:[#allocation5 + $0x150] sm:$0xff]
        %v820 = vld [vmem:[#allocation5 + $0x158] sm:$0xff]
        %v821 = vld [vmem:[#allocation5 + $0x160] sm:$0xff]
        %v822 = vld [vmem:[#allocation5 + $0x168] sm:$0xff]
        %v823 = vld [vmem:[#allocation5 + $0x170] sm:$0xff]
        %v824 = vld [vmem:[#allocation5 + $0x178] sm:$0xff]
        %v825 = vld [vmem:[#allocation5 + $0x180] sm:$0xff]
        %v826 = vld [vmem:[#allocation5 + $0x188] sm:$0xff]
        %v827 = vld [vmem:[#allocation5 + $0x190] sm:$0xff]
        %v828 = vld [vmem:[#allocation5 + $0x198] sm:$0xff]
        %v829 = vld [vmem:[#allocation5 + $0x1a0] sm:$0xff]
        %v830 = vld [vmem:[#allocation5 + $0x1a8] sm:$0xff]
        %v831 = vld [vmem:[#allocation5 + $0x1b0] sm:$0xff]
        %v832 = vld [vmem:[#allocation5 + $0x1b8] sm:$0xff]
        %v833 = vld [vmem:[#allocation5 + $0x1c0] sm:$0xff]
        %v834 = vld [vmem:[#allocation5 + $0x1c8] sm:$0xff]
        %v835 = vld [vmem:[#allocation5 + $0x1d0] sm:$0xff]
        %v836 = vld [vmem:[#allocation5 + $0x1d8] sm:$0xff]
        %v837 = vld [vmem:[#allocation5 + $0x1e0] sm:$0xff]
        %v838 = vld [vmem:[#allocation5 + $0x1e8] sm:$0xff]
        %v839 = vld [vmem:[#allocation5 + $0x1f0] sm:$0xff]
        %v840 = vld [vmem:[#allocation5 + $0x1f8] sm:$0xff]
        %v841 = vld [vmem:[#allocation5 + $0x200] sm:$0xff]
        %v842 = vld [vmem:[#allocation5 + $0x208] sm:$0xff]
        %v843 = vld [vmem:[#allocation5 + $0x210] sm:$0xff]
        %v844 = vld [vmem:[#allocation5 + $0x218] sm:$0xff]
        %v845 = vld [vmem:[#allocation5 + $0x220] sm:$0xff]
        %v846 = vld [vmem:[#allocation5 + $0x228] sm:$0xff]
        %v847 = vld [vmem:[#allocation5 + $0x230] sm:$0xff]
        %v848 = vld [vmem:[#allocation5 + $0x238] sm:$0xff]
        %v849 = vld [vmem:[#allocation5 + $0x240] sm:$0xff]
        %v850 = vld [vmem:[#allocation5 + $0x248] sm:$0xff]
        %v851 = vld [vmem:[#allocation5 + $0x250] sm:$0xff]
        %v852 = vld [vmem:[#allocation5 + $0x258] sm:$0xff]
        %v853 = vld [vmem:[#allocation5 + $0x260] sm:$0xff]
        %v854 = vld [vmem:[#allocation5 + $0x268] sm:$0xff]
        %v855 = vld [vmem:[#allocation5 + $0x270] sm:$0xff]
        %v856 = vld [vmem:[#allocation5 + $0x278] sm:$0xff]
        %v857 = vld [vmem:[#allocation5 + $0x280] sm:$0xff]
        %v858 = vld [vmem:[#allocation5 + $0x288] sm:$0xff]
        %v859 = vld [vmem:[#allocation5 + $0x290] sm:$0xff]
        %v860 = vld [vmem:[#allocation5 + $0x298] sm:$0xff]
        %v861 = vld [vmem:[#allocation5 + $0x2a0] sm:$0xff]
        %v862 = vld [vmem:[#allocation5 + $0x2a8] sm:$0xff]
        %v863 = vld [vmem:[#allocation5 + $0x2b0] sm:$0xff]
        %v864 = vld [vmem:[#allocation5 + $0x2b8] sm:$0xff]
        %v865 = vld [vmem:[#allocation5 + $0x2c0] sm:$0xff]
        %v866 = vld [vmem:[#allocation5 + $0x2c8] sm:$0xff]
        %v867 = vld [vmem:[#allocation5 + $0x2d0] sm:$0xff]
        %v868 = vld [vmem:[#allocation5 + $0x2d8] sm:$0xff]
        %v869 = vld [vmem:[#allocation5 + $0x2e0] sm:$0xff]
        %v870 = vld [vmem:[#allocation5 + $0x2e8] sm:$0xff]
        %v871 = vld [vmem:[#allocation5 + $0x2f0] sm:$0xff]
        %v872 = vld [vmem:[#allocation5 + $0x2f8] sm:$0xff]
        %v873 = vld [vmem:[#allocation5 + $0x300] sm:$0xff]
        %v874 = vld [vmem:[#allocation5 + $0x308] sm:$0xff]
        %v875 = vld [vmem:[#allocation5 + $0x310] sm:$0xff]
        %v876 = vld [vmem:[#allocation5 + $0x318] sm:$0xff]
        %v877 = vld [vmem:[#allocation5 + $0x320] sm:$0xff]
        %v878 = vld [vmem:[#allocation5 + $0x328] sm:$0xff]
        %v879 = vld [vmem:[#allocation5 + $0x330] sm:$0xff]
        %v880 = vld [vmem:[#allocation5 + $0x338] sm:$0xff]
        %v881 = vld [vmem:[#allocation5 + $0x340] sm:$0xff]
        %v882 = vld [vmem:[#allocation5 + $0x348] sm:$0xff]
        %v883 = vld [vmem:[#allocation5 + $0x350] sm:$0xff]
        %v884 = vld [vmem:[#allocation5 + $0x358] sm:$0xff]
        %v885 = vld [vmem:[#allocation5 + $0x360] sm:$0xff]
        %v886 = vld [vmem:[#allocation5 + $0x368] sm:$0xff]
        %v887 = vld [vmem:[#allocation5 + $0x370] sm:$0xff]
        %v888 = vld [vmem:[#allocation5 + $0x378] sm:$0xff]
        %v889 = vld [vmem:[#allocation5 + $0x380] sm:$0xff]
        %v890 = vld [vmem:[#allocation5 + $0x388] sm:$0xff]
        %v891 = vld [vmem:[#allocation5 + $0x390] sm:$0xff]
        %v892 = vld [vmem:[#allocation5 + $0x398] sm:$0xff]
        %v893 = vld [vmem:[#allocation5 + $0x3a0] sm:$0xff]
        %v894 = vld [vmem:[#allocation5 + $0x3a8] sm:$0xff]
        %v895 = vld [vmem:[#allocation5 + $0x3b0] sm:$0xff]
        %v896 = vld [vmem:[#allocation5 + $0x3b8] sm:$0xff]
        %v897 = vld [vmem:[#allocation5 + $0x3c0] sm:$0xff]
        %v898 = vld [vmem:[#allocation5 + $0x3c8] sm:$0xff]
        %v899 = vld [vmem:[#allocation5 + $0x3d0] sm:$0xff]
        %v900 = vld [vmem:[#allocation5 + $0x3d8] sm:$0xff]
        %v901 = vld [vmem:[#allocation5 + $0x3e0] sm:$0xff]
        %v902 = vld [vmem:[#allocation5 + $0x3e8] sm:$0xff]
        %v903 = vld [vmem:[#allocation5 + $0x3f0] sm:$0xff]
        %v904 = vld [vmem:[#allocation5 + $0x3f8] sm:$0xff]
        %v905 = vld [vmem:[#allocation5 + $0x400] sm:$0xff]
        %v906 = vld [vmem:[#allocation5 + $0x408] sm:$0xff]
        %v907 = vld [vmem:[#allocation5 + $0x410] sm:$0xff]
        %v908 = vld [vmem:[#allocation5 + $0x418] sm:$0xff]
        %v909 = vld [vmem:[#allocation5 + $0x420] sm:$0xff]
        %v910 = vld [vmem:[#allocation5 + $0x428] sm:$0xff]
        %v911 = vld [vmem:[#allocation5 + $0x430] sm:$0xff]
        %v912 = vld [vmem:[#allocation5 + $0x438] sm:$0xff]
        %v913 = vld [vmem:[#allocation5 + $0x440] sm:$0xff]
        %v914 = vld [vmem:[#allocation5 + $0x448] sm:$0xff]
        %v915 = vld [vmem:[#allocation5 + $0x450] sm:$0xff]
        %v916 = vld [vmem:[#allocation5 + $0x458] sm:$0xff]
        %v917 = vld [vmem:[#allocation5 + $0x460] sm:$0xff]
        %v918 = vld [vmem:[#allocation5 + $0x468] sm:$0xff]
        %v919 = vld [vmem:[#allocation5 + $0x470] sm:$0xff]
        %v920 = vld [vmem:[#allocation5 + $0x478] sm:$0xff]
        %v921 = vld [vmem:[#allocation5 + $0x480] sm:$0xff]
        %v922 = vld [vmem:[#allocation5 + $0x488] sm:$0xff]
        %v923 = vld [vmem:[#allocation5 + $0x490] sm:$0xff]
        %v924 = vld [vmem:[#allocation5 + $0x498] sm:$0xff]
        %v925 = vld [vmem:[#allocation5 + $0x4a0] sm:$0xff]
        %v926 = vld [vmem:[#allocation5 + $0x4a8] sm:$0xff]
        %v927 = vld [vmem:[#allocation5 + $0x4b0] sm:$0xff]
        %v928 = vld [vmem:[#allocation5 + $0x4b8] sm:$0xff]
        %v929 = vld [vmem:[#allocation5 + $0x4c0] sm:$0xff]
        %v930 = vld [vmem:[#allocation5 + $0x4c8] sm:$0xff]
        %v931 = vld [vmem:[#allocation5 + $0x4d0] sm:$0xff]
        %v932 = vld [vmem:[#allocation5 + $0x4d8] sm:$0xff]
        %v933 = vld [vmem:[#allocation5 + $0x4e0] sm:$0xff]
        %v934 = vld [vmem:[#allocation5 + $0x4e8] sm:$0xff]
        %v935 = vld [vmem:[#allocation5 + $0x4f0] sm:$0xff]
        %v936 = vld [vmem:[#allocation5 + $0x4f8] sm:$0xff]
        %v937 = vld [vmem:[#allocation5 + $0x500] sm:$0xff]
        %v938 = vld [vmem:[#allocation5 + $0x508] sm:$0xff]
        %v939 = vld [vmem:[#allocation5 + $0x510] sm:$0xff]
        %v940 = vld [vmem:[#allocation5 + $0x518] sm:$0xff]
        %v941 = vld [vmem:[#allocation5 + $0x520] sm:$0xff]
        %v942 = vld [vmem:[#allocation5 + $0x528] sm:$0xff]
        %v943 = vld [vmem:[#allocation5 + $0x530] sm:$0xff]
        %v944 = vld [vmem:[#allocation5 + $0x538] sm:$0xff]
        %v945 = vld [vmem:[#allocation5 + $0x540] sm:$0xff]
        %v946 = vld [vmem:[#allocation5 + $0x548] sm:$0xff]
        %v947 = vld [vmem:[#allocation5 + $0x550] sm:$0xff]
        %v948 = vld [vmem:[#allocation5 + $0x558] sm:$0xff]
        %v949 = vld [vmem:[#allocation5 + $0x560] sm:$0xff]
        %v950 = vld [vmem:[#allocation5 + $0x568] sm:$0xff]
        %v951 = vld [vmem:[#allocation5 + $0x570] sm:$0xff]
        %v952 = vld [vmem:[#allocation5 + $0x578] sm:$0xff]
        %v953 = vld [vmem:[#allocation5 + $0x580] sm:$0xff]
        %v954 = vld [vmem:[#allocation5 + $0x588] sm:$0xff]
        %v955 = vld [vmem:[#allocation5 + $0x590] sm:$0xff]
        %v956 = vld [vmem:[#allocation5 + $0x598] sm:$0xff]
        %v957 = vld [vmem:[#allocation5 + $0x5a0] sm:$0xff]
        %v958 = vld [vmem:[#allocation5 + $0x5a8] sm:$0xff]
        %v959 = vld [vmem:[#allocation5 + $0x5b0] sm:$0xff]
        %v960 = vld [vmem:[#allocation5 + $0x5b8] sm:$0xff]
        %v961 = vld [vmem:[#allocation5 + $0x5c0] sm:$0xff]
        %v962 = vld [vmem:[#allocation5 + $0x5c8] sm:$0xff]
        %v963 = vld [vmem:[#allocation5 + $0x5d0] sm:$0xff]
        %v964 = vld [vmem:[#allocation5 + $0x5d8] sm:$0xff]
        %v965 = vld [vmem:[#allocation5 + $0x5e0] sm:$0xff]
        %v966 = vld [vmem:[#allocation5 + $0x5e8] sm:$0xff]
        %v967 = vld [vmem:[#allocation5 + $0x5f0] sm:$0xff]
        %v968 = vld [vmem:[#allocation5 + $0x5f8] sm:$0xff]
        %v969 = vld [vmem:[#allocation5 + $0x600] sm:$0xff]
        %v970 = vld [vmem:[#allocation5 + $0x608] sm:$0xff]
        %v971 = vld [vmem:[#allocation5 + $0x610] sm:$0xff]
        %v972 = vld [vmem:[#allocation5 + $0x618] sm:$0xff]
        %v973 = vld [vmem:[#allocation5 + $0x620] sm:$0xff]
        %v974 = vld [vmem:[#allocation5 + $0x628] sm:$0xff]
        %v975 = vld [vmem:[#allocation5 + $0x630] sm:$0xff]
        %v976 = vld [vmem:[#allocation5 + $0x638] sm:$0xff]
        %v977 = vld [vmem:[#allocation5 + $0x640] sm:$0xff]
        %v978 = vld [vmem:[#allocation5 + $0x648] sm:$0xff]
        %v979 = vld [vmem:[#allocation5 + $0x650] sm:$0xff]
        %v980 = vld [vmem:[#allocation5 + $0x658] sm:$0xff]
        %v981 = vld [vmem:[#allocation5 + $0x660] sm:$0xff]
        %v982 = vld [vmem:[#allocation5 + $0x668] sm:$0xff]
        %v983 = vld [vmem:[#allocation5 + $0x670] sm:$0xff]
        %v984 = vld [vmem:[#allocation5 + $0x678] sm:$0xff]
        %v985 = vld [vmem:[#allocation5 + $0x680] sm:$0xff]
        %v986 = vld [vmem:[#allocation5 + $0x688] sm:$0xff]
        %v987 = vld [vmem:[#allocation5 + $0x690] sm:$0xff]
        %v988 = vld [vmem:[#allocation5 + $0x698] sm:$0xff]
        %v989 = vld [vmem:[#allocation5 + $0x6a0] sm:$0xff]
        %v990 = vld [vmem:[#allocation5 + $0x6a8] sm:$0xff]
        %v991 = vld [vmem:[#allocation5 + $0x6b0] sm:$0xff]
        %v992 = vld [vmem:[#allocation5 + $0x6b8] sm:$0xff]
        %v993 = vld [vmem:[#allocation7] sm:$0xff]
        %v994 = vld [vmem:[#allocation7 + $0x8] sm:$0xff]
        %v995 = vld [vmem:[#allocation7 + $0x10] sm:$0xff]
        %v996 = vld [vmem:[#allocation7 + $0x18] sm:$0xff]
        %v997 = vld [vmem:[#allocation7 + $0x20] sm:$0xff]
        %v998 = vld [vmem:[#allocation7 + $0x28] sm:$0xff]
        %v999 = vld [vmem:[#allocation7 + $0x30] sm:$0xff]
        %v1000 = vld [vmem:[#allocation7 + $0x38] sm:$0xff]
        %v1001 = vld [vmem:[#allocation7 + $0x40] sm:$0xff]
        %v1002 = vld [vmem:[#allocation7 + $0x48] sm:$0xff]
        %v1003 = vld [vmem:[#allocation7 + $0x50] sm:$0xff]
        %v1004 = vld [vmem:[#allocation7 + $0x58] sm:$0xff]
        %v1005 = vld [vmem:[#allocation7 + $0x60] sm:$0xff]
        %v1006 = vld [vmem:[#allocation7 + $0x68] sm:$0xff]
        %v1007 = vld [vmem:[#allocation7 + $0x70] sm:$0xff]
        %v1008 = vld [vmem:[#allocation7 + $0x78] sm:$0xff]
        %v1009 = vld [vmem:[#allocation7 + $0x80] sm:$0xff]
        %v1010 = vld [vmem:[#allocation7 + $0x88] sm:$0xff]
        %v1011 = vld [vmem:[#allocation7 + $0x90] sm:$0xff]
        %v1012 = vld [vmem:[#allocation7 + $0x98] sm:$0xff]
        %v1013 = vld [vmem:[#allocation7 + $0xa0] sm:$0xff]
        %v1014 = vld [vmem:[#allocation7 + $0xa8] sm:$0xff]
        %v1015 = vld [vmem:[#allocation7 + $0xb0] sm:$0xff]
        %v1016 = vld [vmem:[#allocation7 + $0xb8] sm:$0xff]
        %v1017 = vld [vmem:[#allocation7 + $0xc0] sm:$0xff]
        %v1018 = vld [vmem:[#allocation7 + $0xc8] sm:$0xff]
        %v1019 = vld [vmem:[#allocation7 + $0xd0] sm:$0xff]
        %v1020 = vld [vmem:[#allocation7 + $0xd8] sm:$0xff]
        %v1021 = vld [vmem:[#allocation7 + $0xe0] sm:$0xff]
        %v1022 = vld [vmem:[#allocation7 + $0xe8] sm:$0xff]
        %v1023 = vld [vmem:[#allocation7 + $0xf0] sm:$0xff]
        %v1024 = vld [vmem:[#allocation7 + $0xf8] sm:$0xff]
        %1025 = vrot.lane.b32.xlu0 %v309, 120
        %v1026 = vpop.permute.xlu0 %1025
        %1027 = vrot.lane.b32.xlu0 %v312, 120
        %v1028 = vpop.permute.xlu0 %1027
        %1029 = vrot.lane.b32.xlu0 %v314, 120
        %v1030 = vpop.permute.xlu0 %1029
        %1031 = vrot.lane.b32.xlu0 %v316, 120
        %v1032 = vpop.permute.xlu0 %1031
        %vm1033 = vcmask 982016
        %v1034 = vsel %vm1033, %v1026, %v1028
        %v1035 = vsel %vm1033, %v1030, %v1032
        %1038 = vmatprep.subr.mxu0 %v994
        %1039 = vmatpush1.msra.mxu0 %v993
        %1040 = vmatprep.subr.mxu0 %v996
        %1041 = vmatpush1.msra.mxu0 %v995
        %1042 = vmatprep.subr.mxu0 %v998
        %1043 = vmatpush1.msra.mxu0 %v997
        %1044 = vmatprep.subr.mxu0 %v1000
        %1045 = vmatpush1.msra.mxu0 %v999
        %1046 = vmatprep.subr.mxu0 %v1002
        %1047 = vmatpush1.msra.mxu0 %v1001
        %1048 = vmatprep.subr.mxu0 %v1004
        %1049 = vmatpush1.msra.mxu0 %v1003
        %1050 = vmatprep.subr.mxu0 %v1006
        %1051 = vmatpush1.msra.mxu0 %v1005
        %1052 = vmatprep.subr.mxu0 %v1008
        %1053 = vmatpush1.msra.mxu0 %v1007
        %1054 = vmatprep.subr.mxu0 %v1010
        %1055 = vmatpush1.msra.mxu0 %v1009
        %1056 = vmatprep.subr.mxu0 %v1012
        %1057 = vmatpush1.msra.mxu0 %v1011
        %1058 = vmatprep.subr.mxu0 %v1014
        %1059 = vmatpush1.msra.mxu0 %v1013
        %1060 = vmatprep.subr.mxu0 %v1016
        %1061 = vmatpush1.msra.mxu0 %v1015
        %1062 = vmatprep.subr.mxu0 %v1018
        %1063 = vmatpush1.msra.mxu0 %v1017
        %1064 = vmatprep.subr.mxu0 %v1020
        %1065 = vmatpush1.msra.mxu0 %v1019
        %1066 = vmatprep.subr.mxu0 %v1022
        %1067 = vmatpush1.msra.mxu0 %v1021
        %1068 = vmatprep.subr.mxu0 %v1024
        %1069 = vmatpush1.msra.mxu0 %v1023
        %1070 = vmatprep.subr.mxu0 0.0
        %1071 = vmatpush1.msra.mxu0 0.0
        %1072 = vmatprep.subr.mxu0 0.0
        %1073 = vmatpush1.msra.mxu0 0.0
        %1074 = vmatprep.subr.mxu0 0.0
        %1075 = vmatpush1.msra.mxu0 0.0
        %1076 = vmatprep.subr.mxu0 0.0
        %1077 = vmatpush1.msra.mxu0 0.0
        %1078 = vmatprep.subr.mxu0 0.0
        %1079 = vmatpush1.msra.mxu0 0.0
        %1080 = vmatprep.subr.mxu0 0.0
        %1081 = vmatpush1.msra.mxu0 0.0
        %1082 = vmatprep.subr.mxu0 0.0
        %1083 = vmatpush1.msra.mxu0 0.0
        %1084 = vmatprep.subr.mxu0 0.0
        %1085 = vmatpush1.msra.mxu0 0.0
        %1086 = vmatprep.subr.mxu0 0.0
        %1087 = vmatpush1.msra.mxu0 0.0
        %1088 = vmatprep.subr.mxu0 0.0
        %1089 = vmatpush1.msra.mxu0 0.0
        %1090 = vmatprep.subr.mxu0 0.0
        %1091 = vmatpush1.msra.mxu0 0.0
        %1092 = vmatprep.subr.mxu0 0.0
        %1093 = vmatpush1.msra.mxu0 0.0
        %1094 = vmatprep.subr.mxu0 0.0
        %1095 = vmatpush1.msra.mxu0 0.0
        %1096 = vmatprep.subr.mxu0 0.0
        %1097 = vmatpush1.msra.mxu0 0.0
        %1098 = vmatprep.subr.mxu0 0.0
        %1099 = vmatpush1.msra.mxu0 0.0
        %1100 = vmatprep.subr.mxu0 0.0
        %1101 = vmatpush1.msra.mxu0 0.0
        %1102 = vmatprep.mubr.f32.mxu0 0.0
        %1103 = vmatmul.mubr.f32.gmra.mrb[0].mxu0 %v1034
        %v1104 = vpop.f32.mrb[0].mxu0
        %v1105 = vadd.f32 0.0, %v1104
        %v1106 = vpop.f32.mrb[0].mxu0
        %v1107 = vadd.f32 0.0, %v1106
        %1108 = vmatprep.mubr.f32.mxu0 0.0
        %1109 = vmatmul.mubr.f32.gmra.mrb[0].mxu0 %v1035
        %v1110 = vpop.f32.mrb[0].mxu0
        %v1111 = vadd.f32 0.0, %v1110
        %v1112 = vpop.f32.mrb[0].mxu0
        %v1113 = vadd.f32 0.0, %v1112
        %1114 = vdwg.mxu0
        %vm1115 = vcmask 785408
        %v1116 = vsel %vm1115, %v766, 0
        %v1118 = vsel %vm1115, %v768, 0
        %1120 = vmatprep.subr.mxu0 %v778
        %1121 = vmatpush1.msra.mxu0 %v777
        %1122 = vmatprep.subr.mxu0 %v780
        %1123 = vmatpush1.msra.mxu0 %v779
        %1124 = vmatprep.subr.mxu0 %v782
        %1125 = vmatpush1.msra.mxu0 %v781
        %1126 = vmatprep.subr.mxu0 %v784
        %1127 = vmatpush1.msra.mxu0 %v783
        %1128 = vmatprep.subr.mxu0 %v786
        %1129 = vmatpush1.msra.mxu0 %v785
        %1130 = vmatprep.subr.mxu0 %v788
        %1131 = vmatpush1.msra.mxu0 %v787
        %1132 = vmatprep.subr.mxu0 %v790
        %1133 = vmatpush1.msra.mxu0 %v789
        %1134 = vmatprep.subr.mxu0 %v792
        %1135 = vmatpush1.msra.mxu0 %v791
        %1136 = vmatprep.subr.mxu0 %v794
        %1137 = vmatpush1.msra.mxu0 %v793
        %1138 = vmatprep.subr.mxu0 %v796
        %1139 = vmatpush1.msra.mxu0 %v795
        %1140 = vmatprep.subr.mxu0 %v798
        %1141 = vmatpush1.msra.mxu0 %v797
        %1142 = vmatprep.subr.mxu0 %v800
        %1143 = vmatpush1.msra.mxu0 %v799
        %1144 = vmatprep.subr.mxu0 %v802
        %1145 = vmatpush1.msra.mxu0 %v801
        %1146 = vmatprep.subr.mxu0 %v804
        %1147 = vmatpush1.msra.mxu0 %v803
        %1148 = vmatprep.subr.mxu0 %v806
        %1149 = vmatpush1.msra.mxu0 %v805
        %1150 = vmatprep.subr.mxu0 %v808
        %1151 = vmatpush1.msra.mxu0 %v807
        %1152 = vmatprep.subr.mxu0 %v810
        %1153 = vmatpush1.msra.mxu0 %v809
        %1154 = vmatprep.subr.mxu0 %v812
        %1155 = vmatpush1.msra.mxu0 %v811
        %1156 = vmatprep.subr.mxu0 %v814
        %1157 = vmatpush1.msra.mxu0 %v813
        %1158 = vmatprep.subr.mxu0 %v816
        %1159 = vmatpush1.msra.mxu0 %v815
        %1160 = vmatprep.subr.mxu0 %v818
        %1161 = vmatpush1.msra.mxu0 %v817
        %1162 = vmatprep.subr.mxu0 %v820
        %1163 = vmatpush1.msra.mxu0 %v819
        %1164 = vmatprep.subr.mxu0 %v822
        %1165 = vmatpush1.msra.mxu0 %v821
        %1166 = vmatprep.subr.mxu0 %v824
        %1167 = vmatpush1.msra.mxu0 %v823
        %1168 = vmatprep.subr.mxu0 %v826
        %1169 = vmatpush1.msra.mxu0 %v825
        %1170 = vmatprep.subr.mxu0 %v828
        %1171 = vmatpush1.msra.mxu0 %v827
        %1172 = vmatprep.subr.mxu0 %v830
        %1173 = vmatpush1.msra.mxu0 %v829
        %1174 = vmatprep.subr.mxu0 %v832
        %1175 = vmatpush1.msra.mxu0 %v831
        %1176 = vmatprep.subr.mxu0 %v834
        %1177 = vmatpush1.msra.mxu0 %v833
        %1178 = vmatprep.subr.mxu0 %v836
        %1179 = vmatpush1.msra.mxu0 %v835
        %1180 = vmatprep.subr.mxu0 %v838
        %1181 = vmatpush1.msra.mxu0 %v837
        %1182 = vmatprep.subr.mxu0 %v840
        %1183 = vmatpush1.msra.mxu0 %v839
        %1184 = vmatprep.mubr.f32.mxu0 %v689
        %1185 = vmatmul.mubr.f32.gmra.mrb[0].mxu0 %v688
        %v1186 = vpop.f32.mrb[0].mxu0
        %v1187 = vadd.f32 %v1105, %v1186
        %v1188 = vpop.f32.mrb[0].mxu0
        %v1189 = vadd.f32 %v1107, %v1188
        %1190 = vmatprep.mubr.f32.mxu0 %v676
        %1191 = vmatmul.mubr.f32.gmra.mrb[0].mxu0 %v674
        %v1192 = vpop.f32.mrb[0].mxu0
        %v1193 = vadd.f32 %v1111, %v1192
        %v1194 = vpop.f32.mrb[0].mxu0
        %v1195 = vadd.f32 %v1113, %v1194
        %1196 = vdwg.mxu0
        %1197 = vmatprep.subr.mxu0 %v842
        %1198 = vmatpush1.msra.mxu0 %v841
        %1199 = vmatprep.subr.mxu0 %v844
        %1200 = vmatpush1.msra.mxu0 %v843
        %1201 = vmatprep.subr.mxu0 %v846
        %1202 = vmatpush1.msra.mxu0 %v845
        %1203 = vmatprep.subr.mxu0 %v848
        %1204 = vmatpush1.msra.mxu0 %v847
        %1205 = vmatprep.subr.mxu0 %v850
        %1206 = vmatpush1.msra.mxu0 %v849
        %1207 = vmatprep.subr.mxu0 %v852
        %1208 = vmatpush1.msra.mxu0 %v851
        %1209 = vmatprep.subr.mxu0 %v854
        %1210 = vmatpush1.msra.mxu0 %v853
        %1211 = vmatprep.subr.mxu0 %v856
        %1212 = vmatpush1.msra.mxu0 %v855
        %1213 = vmatprep.subr.mxu0 %v858
        %1214 = vmatpush1.msra.mxu0 %v857
        %1215 = vmatprep.subr.mxu0 %v860
        %1216 = vmatpush1.msra.mxu0 %v859
        %1217 = vmatprep.subr.mxu0 %v862
        %1218 = vmatpush1.msra.mxu0 %v861
        %1219 = vmatprep.subr.mxu0 %v864
        %1220 = vmatpush1.msra.mxu0 %v863
        %1221 = vmatprep.subr.mxu0 %v866
        %1222 = vmatpush1.msra.mxu0 %v865
        %1223 = vmatprep.subr.mxu0 %v868
        %1224 = vmatpush1.msra.mxu0 %v867
        %1225 = vmatprep.subr.mxu0 %v870
        %1226 = vmatpush1.msra.mxu0 %v869
        %1227 = vmatprep.subr.mxu0 %v872
        %1228 = vmatpush1.msra.mxu0 %v871
        %1229 = vmatprep.subr.mxu0 %v874
        %1230 = vmatpush1.msra.mxu0 %v873
        %1231 = vmatprep.subr.mxu0 %v876
        %1232 = vmatpush1.msra.mxu0 %v875
        %1233 = vmatprep.subr.mxu0 %v878
        %1234 = vmatpush1.msra.mxu0 %v877
        %1235 = vmatprep.subr.mxu0 %v880
        %1236 = vmatpush1.msra.mxu0 %v879
        %1237 = vmatprep.subr.mxu0 %v882
        %1238 = vmatpush1.msra.mxu0 %v881
        %1239 = vmatprep.subr.mxu0 %v884
        %1240 = vmatpush1.msra.mxu0 %v883
        %1241 = vmatprep.subr.mxu0 %v886
        %1242 = vmatpush1.msra.mxu0 %v885
        %1243 = vmatprep.subr.mxu0 %v888
        %1244 = vmatpush1.msra.mxu0 %v887
        %1245 = vmatprep.subr.mxu0 %v890
        %1246 = vmatpush1.msra.mxu0 %v889
        %1247 = vmatprep.subr.mxu0 %v892
        %1248 = vmatpush1.msra.mxu0 %v891
        %1249 = vmatprep.subr.mxu0 %v894
        %1250 = vmatpush1.msra.mxu0 %v893
        %1251 = vmatprep.subr.mxu0 %v896
        %1252 = vmatpush1.msra.mxu0 %v895
        %1253 = vmatprep.subr.mxu0 %v898
        %1254 = vmatpush1.msra.mxu0 %v897
        %1255 = vmatprep.subr.mxu0 %v900
        %1256 = vmatpush1.msra.mxu0 %v899
        %1257 = vmatprep.subr.mxu0 %v902
        %1258 = vmatpush1.msra.mxu0 %v901
        %1259 = vmatprep.subr.mxu0 %v904
        %1260 = vmatpush1.msra.mxu0 %v903
        %1261 = vmatprep.mubr.f32.mxu0 %v727
        %1262 = vmatmul.mubr.f32.gmra.mrb[0].mxu0 %v773
        %v1263 = vpop.f32.mrb[0].mxu0
        %v1264 = vadd.f32 %v1187, %v1263
        %v1265 = vpop.f32.mrb[0].mxu0
        %v1266 = vadd.f32 %v1189, %v1265
        %1267 = vmatprep.mubr.f32.mxu0 %v729
        %1268 = vmatmul.mubr.f32.gmra.mrb[0].mxu0 %v774
        %v1269 = vpop.f32.mrb[0].mxu0
        %v1270 = vadd.f32 %v1193, %v1269
        %v1271 = vpop.f32.mrb[0].mxu0
        %v1272 = vadd.f32 %v1195, %v1271
        %1273 = vdwg.mxu0
        %1274 = vmatprep.subr.mxu0 %v906
        %1275 = vmatpush1.msra.mxu0 %v905
        %1276 = vmatprep.subr.mxu0 %v908
        %1277 = vmatpush1.msra.mxu0 %v907
        %1278 = vmatprep.subr.mxu0 %v910
        %1279 = vmatpush1.msra.mxu0 %v909
        %1280 = vmatprep.subr.mxu0 %v912
        %1281 = vmatpush1.msra.mxu0 %v911
        %1282 = vmatprep.subr.mxu0 %v914
        %1283 = vmatpush1.msra.mxu0 %v913
        %1284 = vmatprep.subr.mxu0 %v916
        %1285 = vmatpush1.msra.mxu0 %v915
        %1286 = vmatprep.subr.mxu0 %v918
        %1287 = vmatpush1.msra.mxu0 %v917
        %1288 = vmatprep.subr.mxu0 %v920
        %1289 = vmatpush1.msra.mxu0 %v919
        %1290 = vmatprep.subr.mxu0 %v922
        %1291 = vmatpush1.msra.mxu0 %v921
        %1292 = vmatprep.subr.mxu0 %v924
        %1293 = vmatpush1.msra.mxu0 %v923
        %1294 = vmatprep.subr.mxu0 %v926
        %1295 = vmatpush1.msra.mxu0 %v925
        %1296 = vmatprep.subr.mxu0 %v928
        %1297 = vmatpush1.msra.mxu0 %v927
        %1298 = vmatprep.subr.mxu0 %v930
        %1299 = vmatpush1.msra.mxu0 %v929
        %1300 = vmatprep.subr.mxu0 %v932
        %1301 = vmatpush1.msra.mxu0 %v931
        %1302 = vmatprep.subr.mxu0 %v934
        %1303 = vmatpush1.msra.mxu0 %v933
        %1304 = vmatprep.subr.mxu0 %v936
        %1305 = vmatpush1.msra.mxu0 %v935
        %1306 = vmatprep.subr.mxu0 %v938
        %1307 = vmatpush1.msra.mxu0 %v937
        %1308 = vmatprep.subr.mxu0 %v940
        %1309 = vmatpush1.msra.mxu0 %v939
        %1310 = vmatprep.subr.mxu0 %v942
        %1311 = vmatpush1.msra.mxu0 %v941
        %1312 = vmatprep.subr.mxu0 %v944
        %1313 = vmatpush1.msra.mxu0 %v943
        %1314 = vmatprep.subr.mxu0 %v946
        %1315 = vmatpush1.msra.mxu0 %v945
        %1316 = vmatprep.subr.mxu0 %v948
        %1317 = vmatpush1.msra.mxu0 %v947
        %1318 = vmatprep.subr.mxu0 %v950
        %1319 = vmatpush1.msra.mxu0 %v949
        %1320 = vmatprep.subr.mxu0 %v952
        %1321 = vmatpush1.msra.mxu0 %v951
        %1322 = vmatprep.subr.mxu0 %v954
        %1323 = vmatpush1.msra.mxu0 %v953
        %1324 = vmatprep.subr.mxu0 %v956
        %1325 = vmatpush1.msra.mxu0 %v955
        %1326 = vmatprep.subr.mxu0 %v958
        %1327 = vmatpush1.msra.mxu0 %v957
        %1328 = vmatprep.subr.mxu0 %v960
        %1329 = vmatpush1.msra.mxu0 %v959
        %1330 = vmatprep.subr.mxu0 %v962
        %1331 = vmatpush1.msra.mxu0 %v961
        %1332 = vmatprep.subr.mxu0 %v964
        %1333 = vmatpush1.msra.mxu0 %v963
        %1334 = vmatprep.subr.mxu0 %v966
        %1335 = vmatpush1.msra.mxu0 %v965
        %1336 = vmatprep.subr.mxu0 %v968
        %1337 = vmatpush1.msra.mxu0 %v967
        %1338 = vmatprep.mubr.f32.mxu0 %v765
        %1339 = vmatmul.mubr.f32.gmra.mrb[0].mxu0 %v775
        %v1340 = vpop.f32.mrb[0].mxu0
        %v1341 = vadd.f32 %v1264, %v1340
        %v1342 = vpop.f32.mrb[0].mxu0
        %v1343 = vadd.f32 %v1266, %v1342
        %1344 = vmatprep.mubr.f32.mxu0 %v767
        %1345 = vmatmul.mubr.f32.gmra.mrb[0].mxu0 %v776
        %v1346 = vpop.f32.mrb[0].mxu0
        %v1347 = vadd.f32 %v1270, %v1346
        %v1348 = vpop.f32.mrb[0].mxu0
        %v1349 = vadd.f32 %v1272, %v1348
        %1350 = vdwg.mxu0
        %1351 = vmatprep.subr.mxu0 %v970
        %1352 = vmatpush1.msra.mxu0 %v969
        %1353 = vmatprep.subr.mxu0 %v972
        %1354 = vmatpush1.msra.mxu0 %v971
        %1355 = vmatprep.subr.mxu0 %v974
        %1356 = vmatpush1.msra.mxu0 %v973
        %1357 = vmatprep.subr.mxu0 %v976
        %1358 = vmatpush1.msra.mxu0 %v975
        %1359 = vmatprep.subr.mxu0 %v978
        %1360 = vmatpush1.msra.mxu0 %v977
        %1361 = vmatprep.subr.mxu0 %v980
        %1362 = vmatpush1.msra.mxu0 %v979
        %1363 = vmatprep.subr.mxu0 %v982
        %1364 = vmatpush1.msra.mxu0 %v981
        %1365 = vmatprep.subr.mxu0 %v984
        %1366 = vmatpush1.msra.mxu0 %v983
        %1367 = vmatprep.subr.mxu0 %v986
        %1368 = vmatpush1.msra.mxu0 %v985
        %1369 = vmatprep.subr.mxu0 %v988
        %1370 = vmatpush1.msra.mxu0 %v987
        %1371 = vmatprep.subr.mxu0 %v990
        %1372 = vmatpush1.msra.mxu0 %v989
        %1373 = vmatprep.subr.mxu0 %v992
        %1374 = vmatpush1.msra.mxu0 %v991
        %1375 = vmatprep.subr.mxu0 0.0
        %1376 = vmatpush1.msra.mxu0 0.0
        %1377 = vmatprep.subr.mxu0 0.0
        %1378 = vmatpush1.msra.mxu0 0.0
        %1379 = vmatprep.subr.mxu0 0.0
        %1380 = vmatpush1.msra.mxu0 0.0
        %1381 = vmatprep.subr.mxu0 0.0
        %1382 = vmatpush1.msra.mxu0 0.0
        %1383 = vmatprep.subr.mxu0 0.0
        %1384 = vmatpush1.msra.mxu0 0.0
        %1385 = vmatprep.subr.mxu0 0.0
        %1386 = vmatpush1.msra.mxu0 0.0
        %1387 = vmatprep.subr.mxu0 0.0
        %1388 = vmatpush1.msra.mxu0 0.0
        %1389 = vmatprep.subr.mxu0 0.0
        %1390 = vmatpush1.msra.mxu0 0.0
        %1391 = vmatprep.subr.mxu0 0.0
        %1392 = vmatpush1.msra.mxu0 0.0
        %1393 = vmatprep.subr.mxu0 0.0
        %1394 = vmatpush1.msra.mxu0 0.0
        %1395 = vmatprep.subr.mxu0 0.0
        %1396 = vmatpush1.msra.mxu0 0.0
        %1397 = vmatprep.subr.mxu0 0.0
        %1398 = vmatpush1.msra.mxu0 0.0
        %1399 = vmatprep.subr.mxu0 0.0
        %1400 = vmatpush1.msra.mxu0 0.0
        %1401 = vmatprep.subr.mxu0 0.0
        %1402 = vmatpush1.msra.mxu0 0.0
        %1403 = vmatprep.subr.mxu0 0.0
        %1404 = vmatpush1.msra.mxu0 0.0
        %1405 = vmatprep.subr.mxu0 0.0
        %1406 = vmatpush1.msra.mxu0 0.0
        %1407 = vmatprep.subr.mxu0 0.0
        %1408 = vmatpush1.msra.mxu0 0.0
        %1409 = vmatprep.subr.mxu0 0.0
        %1410 = vmatpush1.msra.mxu0 0.0
        %1411 = vmatprep.subr.mxu0 0.0
        %1412 = vmatpush1.msra.mxu0 0.0
        %1413 = vmatprep.subr.mxu0 0.0
        %1414 = vmatpush1.msra.mxu0 0.0
        %1415 = vmatprep.mubr.f32.mxu0 0.0
        %1416 = vmatmul.mubr.f32.gmra.mrb[0].mxu0 %v1116
        %v1417 = vpop.f32.mrb[0].mxu0
        %v1418 = vadd.f32 %v1341, %v1417
        %v1419 = vpop.f32.mrb[0].mxu0
        %v1420 = vadd.f32 %v1343, %v1419
        %1421 = vmatprep.mubr.f32.mxu0 0.0
        %1422 = vmatmul.mubr.f32.gmra.mrb[0].mxu0 %v1118
        %v1423 = vpop.f32.mrb[0].mxu0
        %v1424 = vadd.f32 %v1347, %v1423
        %v1425 = vpop.f32.mrb[0].mxu0
        %v1426 = vadd.f32 %v1349, %v1425
        %1427 = vdwg.mxu0
        %v1428 = vld [vmem:[%s5] sm:$0x3]
        %v1430 = vlaneseq
        %v1431 = vshrl.u32 %v1430, 7
        %v1432 = vsub.s32 0, %v1431
        %v1433 = vrot.slane %v1428, %v1432
        %v1434 = vlaneseq
        %v1435 = vshrl.u32 %v1434, 7
        %v1436 = vsub.s32 1, %v1435
        %v1437 = vrot.slane %v1428, %v1436
        %v1440 = vadd.f32 %v1418, %v1433
        %v1441 = vadd.f32 %v1420, %v1437
        %v1442 = vadd.f32 %v1424, %v1433
        %v1443 = vadd.f32 %v1426, %v1437
        %v1444 = vmax.f32 %v1440, 0.0
        %v1445 = vmax.f32 %v1441, 0.0
        %v1446 = vmax.f32 %v1442, 0.0
        %v1447 = vmax.f32 %v1443, 0.0
        %1448 = vst [vmem:[%s288] sm:$0xff] %v1444
        %1449 = vst [vmem:[%s288 + $0x8] sm:$0xff] %v1445
        %1450 = vst [vmem:[%s288 + $0x10] sm:$0xff] %v1446
        %1451 = vst [vmem:[%s288 + $0x18] sm:$0xff] %v1447
        %s1452 = sand.u32 %s161, 1
        %s1453 = scalar_lea.sflag [#allocation4], %s1452
        %s1454 = sand.u32 %s161, 1
        %s1455 = smul.addr %s1454, 32
        %s1456 = scalar_lea.vmem [#allocation8], %s1455
        // Predicated region
        $region57: #{tpu_custom_call.1} parent=43 // pred_check
          %p1457 = pneg %p171
        $region58: #{tpu_custom_call.1} parent=43 // pred_check_branch
          %1459 = sbr.rel (%p1457) target = $region60
        $region59: #{tpu_custom_call.1} parent=43 // pred_region
          %s1461 = ssub.s32 512, 512
          %1462 = vsyncadd %s1453, %s1461
          %s1463 = smul.addr %s22, 4
          %s1464 = smul.addr %s1463, 128
          %s1465 = scalar_lea.hbm %s6, %s1464
          %s1466 = sshll.u32 %s1456, 4
          %s1467 = int_to_ptr.vmem [resolvable:$true] %s1466
          %1472 = dma.vmem_to_hbm [thread:$0]  %s1467, 512, %s1465, %s1453, 256, 256, 16
        $region60: #{tpu_custom_call.1} parent=43 // pred_fallthru
          _
      $region44: #{tpu_custom_call.1} parent=5 // pred_fallthru
        _
      %p1473 = scmp.le.s32.totalorder 2, %s17
      // Predicated region
      $region61: #{tpu_custom_call.1} parent=5 // pred_check
        %p1474 = pneg %p1473
      $region62: #{tpu_custom_call.1} parent=5 // pred_check_branch
        %1476 = sbr.rel (%p1474) target = $region64
      $region63: #{tpu_custom_call.1} parent=5 // pred_region
        %s1477 = ssub.s32 %s17, 2
        // Predicated region
        $region65: #{tpu_custom_call.1} parent=63 // pred_check
          %p1478 = pneg %p177
        $region66: #{tpu_custom_call.1} parent=63 // pred_check_branch
          %1480 = sbr.rel (%p1478) target = $region68
        $region67: #{tpu_custom_call.1} parent=63 // pred_region
          %s1481 = sand.u32 %s162, 1
          %s1482 = scalar_lea.sflag [#allocation4], %s1481
          %s1483 = sand.u32 %s162, 1
          %s1484 = smul.addr %s1483, 32
          %s1485 = scalar_lea.vmem [#allocation8], %s1484
          %1486 = dma.done %s1482, 512
        $region68: #{tpu_custom_call.1} parent=63 // pred_fallthru
          _
      $region64: #{tpu_custom_call.1} parent=5 // pred_fallthru
        _
    $region6: #{tpu_custom_call.1} parent=1 // loop_footer
      %s21 = sadd.s32 1, %s17
    $region7: #{tpu_custom_call.1} parent=1 // loop_footer_branch
      %16 = sbr.rel target = $region3
    $region8: #{tpu_custom_call.1} parent=1 // loop_exit
      _
    %1487 = vsyncpa [#allocation3], 1
    %s1488 = scalar_lea.sflag [#allocation3], 1
    %1489 = vsyncpa %s1488, 1
    %1490 = vsyncpa [#allocation6], 1
    %1491 = vsyncpa [#allocation4], 1
    %s1492 = scalar_lea.sflag [#allocation4], 1
    %1493 = vsyncpa %s1492, 1

</llo_original>
